<compile_context>
chip_gen: v7x
topology: tpu7x:2x2x1
jax: 0.10.0
libtpu: 0.0.40
codegen_flags: <defaults>
</compile_context>

<pallas_src>
import jax
import jax.numpy as jnp
from jax.experimental import pallas as pl
from jax.experimental.pallas import tpu as pltpu


def _round_up(x, m):
    return ((x + m - 1) // m) * m


def _default_lane_target():
    """256 lanes for the 256x256-MXU generations (v6e/v7x), 128 for <= v5."""
    try:
        kind = jax.devices()[0].device_kind.lower()
    except Exception:
        return 256
    for tag in ("v2", "v3", "v4", "v5"):
        if tag in kind:
            return 128
    return 256


def _block_diag(W, p):
    """p copies of W [d_in, d_out] along the diagonal -> [p*d_in, p*d_out]."""
    if p == 1:
        return W
    d_in, d_out = W.shape
    out = jnp.zeros((p * d_in, p * d_out), W.dtype)
    for k in range(p):
        out = out.at[k * d_in:(k + 1) * d_in, k * d_out:(k + 1) * d_out].set(W)
    return out


def _make_mlp_kernel(n_hidden):
    """(x_i * x_j) -> [Linear(+folded BN) -> ReLU] * n_hidden -> Linear.

    Elementwise math (product, bias, ReLU) stays f32 (v5e VPU has no bf16 VALU);
    only MXU operands are bf16, accumulation is f32.
    """

    def kernel(*refs):
        xi_ref, xj_ref = refs[0], refs[1]
        out_ref = refs[-1]
        idx = 2

        x = xi_ref[...] * xj_ref[...]                       # f32 product (VPU)

        for _ in range(n_hidden):
            w_ref, b_ref = refs[idx], refs[idx + 1]
            idx += 2
            h = jnp.dot(x.astype(jnp.bfloat16), w_ref[...],
                        preferred_element_type=jnp.float32) + b_ref[...]
            x = jnp.maximum(h, 0.0)                         # ReLU; dropout identity (eval)

        w_ref, b_ref = refs[idx], refs[idx + 1]
        out_ref[...] = jnp.dot(x.astype(jnp.bfloat16), w_ref[...],
                               preferred_element_type=jnp.float32) + b_ref[...]

    return kernel


def link_predictor_forward(x_i, x_j, params, *, left=True, tile_n=4096, pack=None):
    """Fused LinkPredictor forward (eval mode). x_i, x_j: [N, in_channels] float32."""
    N, in_ch = x_i.shape
    lins = params["lins"]                               # list of (W[in,out], b[out])
    bns = params["bns"] if left else params["bns_r"]    # list of (gamma, beta, mean, var)
    eps = params["eps"]
    n_hidden = len(lins) - 1
    out_ch = lins[-1][0].shape[1]

    # Fold eval-mode BatchNorm into the Linear (tiny one-time op):
    #   BN(xW + b) = x (W*scale) + (b*scale + shift),
    #   scale = gamma / sqrt(var + eps), shift = beta - mean*scale.
    folded = []
    for l in range(n_hidden):
        W, b = lins[l]
        gamma, beta, mean, var = bns[l]
        scale = gamma / jnp.sqrt(var + eps)
        shift = beta - mean * scale
        folded.append((W * scale[None, :], b * scale + shift))
    W_last, b_last = lins[-1]
    folded.append((W_last, b_last))

    # Lane packing: `pack` original rows per vreg row so 32-wide channels fill
    # 128/256 lanes.  Weights become block-diagonal, biases are tiled.
    act_widths = [in_ch] + [W.shape[1] for W, _ in folded[:-1]]
    if pack is None:
        pack = max(1, _default_lane_target() // max(act_widths))

    # Pad rows to a multiple of (pack lanes x 8 sublanes) so the packed array is
    # always sublane-aligned and row tiles never exceed the array.
    N_pad = _round_up(N, pack * 8)
    if N_pad != N:
        padw = ((0, N_pad - N), (0, 0))
        x_i_p, x_j_p = jnp.pad(x_i, padw), jnp.pad(x_j, padw)
    else:
        x_i_p, x_j_p = x_i, x_j
    Np = N_pad // pack
    xi_packed = x_i_p.reshape(Np, pack * in_ch)        # zero-copy row-major reshape
    xj_packed = x_j_p.reshape(Np, pack * in_ch)

    # Packed weights feed the MXU as bf16 (f32 accumulation); biases stay f32.
    packed_layers = []
    for W, b in folded:
        Wp = _block_diag(W, pack).astype(jnp.bfloat16)
        bp = jnp.tile(b, pack).reshape(1, -1).astype(jnp.float32)
        packed_layers.append((Wp, bp))

    # Row tile (in packed rows): big enough to amortize the ~0.35us per-step
    # overhead, capped so the "parallel" grid axis keeps >= 2 steps for v7x's
    # two TensorCores (no cost on single-TC v5e/v6e).
    tile_p = _round_up(max(1, tile_n // pack), 8)
    tile_p = min(tile_p, Np)
    half = Np // 2
    if half >= 8:
        tile_p = min(tile_p, (half // 8) * 8)
    tile_p = max(8, tile_p)

    operands = [xi_packed, xj_packed]
    in_specs = [
        pl.BlockSpec((tile_p, pack * in_ch), lambda i: (i, 0)),
        pl.BlockSpec((tile_p, pack * in_ch), lambda i: (i, 0)),
    ]
    for Wp, bp in packed_layers:
        operands += [Wp, bp]
        in_specs += [
            pl.BlockSpec(Wp.shape, lambda i: (0, 0)),   # grid-invariant block
            pl.BlockSpec(bp.shape, lambda i: (0, 0)),
        ]

    # Advisory cost hint so XLA can overlap this call with surrounding graph work.
    flops = N_pad * in_ch
    for W, _ in folded:
        flops += 2 * N_pad * W.shape[0] * W.shape[1] + 2 * N_pad * W.shape[1]
    bytes_accessed = (
        2 * N_pad * in_ch * 4 + N_pad * out_ch * 4
        + sum(Wp.size * Wp.dtype.itemsize + bp.size * bp.dtype.itemsize
              for Wp, bp in packed_layers))

    out = pl.pallas_call(
        _make_mlp_kernel(n_hidden),
        out_shape=jax.ShapeDtypeStruct((Np, pack * out_ch), jnp.float32),
        grid_spec=pltpu.PrefetchScalarGridSpec(
            num_scalar_prefetch=0,
            grid=(pl.cdiv(Np, tile_p),),
            in_specs=in_specs,
            out_specs=pl.BlockSpec((tile_p, pack * out_ch), lambda i: (i, 0)),
        ),
        compiler_params=pltpu.CompilerParams(
            dimension_semantics=("parallel",),
        ),
        cost_estimate=pl.CostEstimate(
            flops=int(flops), transcendentals=0, bytes_accessed=int(bytes_accessed)),
    )(*operands)

    # Un-pack: [Np, pack*out_ch] -> [N_pad, out_ch], drop padded rows, squeeze(1).
    out = out.reshape(N_pad, out_ch)[:N]
    if out_ch == 1:
        out = out[:, 0]
    return out


def init_params(key, in_channels, hidden_channels, out_channels, num_layers):
    """Deterministic synthetic parameter init matching the module's shapes."""
    dims = [in_channels] + [hidden_channels] * (num_layers - 1) + [out_channels]
    lins, bns, bns_r = [], [], []
    for l in range(num_layers):
        key, kw, kb = jax.random.split(key, 3)
        fan_in, fan_out = dims[l], dims[l + 1]
        bound = 1.0 / jnp.sqrt(fan_in)
        # PyTorch Linear weight is [out, in]; store transposed as [in, out].
        W = jax.random.uniform(kw, (fan_in, fan_out), jnp.float32, -bound, bound)
        b = jax.random.uniform(kb, (fan_out,), jnp.float32, -bound, bound)
        lins.append((W, b))
    for l in range(num_layers - 1):
        h = hidden_channels
        key, k1, k2, k3, k4, k5, k6, k7, k8 = jax.random.split(key, 9)
        bns.append((
            1.0 + 0.1 * jax.random.normal(k1, (h,), jnp.float32),          # gamma
            0.1 * jax.random.normal(k2, (h,), jnp.float32),                # beta
            0.1 * jax.random.normal(k3, (h,), jnp.float32),                # running_mean
            jnp.abs(1.0 + 0.1 * jax.random.normal(k4, (h,), jnp.float32)), # running_var
        ))
        bns_r.append((
            1.0 + 0.1 * jax.random.normal(k5, (h,), jnp.float32),
            0.1 * jax.random.normal(k6, (h,), jnp.float32),
            0.1 * jax.random.normal(k7, (h,), jnp.float32),
            jnp.abs(1.0 + 0.1 * jax.random.normal(k8, (h,), jnp.float32)),
        ))
    return {"lins": lins, "bns": bns, "bns_r": bns_r, "eps": 1e-5}


def _reference_forward(x_i, x_j, params, left=True):
    """Plain-f32 JAX reference mirroring the PyTorch forward (eval mode)."""
    lins = params["lins"]
    bns = params["bns"] if left else params["bns_r"]
    eps = params["eps"]
    x = x_i * x_j
    for l in range(len(lins) - 1):
        W, b = lins[l]
        x = jnp.dot(x, W, precision=jax.lax.Precision.HIGHEST) + b
        gamma, beta, mean, var = bns[l]
        x = gamma * (x - mean) / jnp.sqrt(var + eps) + beta
        x = jnp.maximum(x, 0.0)       # dropout identity in eval mode
    W, b = lins[-1]
    x = jnp.dot(x, W, precision=jax.lax.Precision.HIGHEST) + b
    return x[:, 0] if x.shape[1] == 1 else x


def _reference_forward_bf16(x_i, x_j, params, left=True):
    """Reference matching the kernel's numerics: BN folded, bf16 MXU operands."""
    lins = params["lins"]
    bns = params["bns"] if left else params["bns_r"]
    eps = params["eps"]
    x = x_i * x_j
    for l in range(len(lins) - 1):
        W, b = lins[l]
        gamma, beta, mean, var = bns[l]
        scale = gamma / jnp.sqrt(var + eps)
        shift = beta - mean * scale
        Wf = (W * scale[None, :]).astype(jnp.bfloat16)
        bf = b * scale + shift
        x = jnp.dot(x.astype(jnp.bfloat16), Wf, preferred_element_type=jnp.float32) + bf
        x = jnp.maximum(x, 0.0)
    W, b = lins[-1]
    x = jnp.dot(x.astype(jnp.bfloat16), W.astype(jnp.bfloat16),
                preferred_element_type=jnp.float32) + b
    return x[:, 0] if x.shape[1] == 1 else x


if __name__ == "__main__":
    # Shapes consistent with the module's forward:
    # N node pairs, in_channels=32, hidden_channels=32, out_channels=1, num_layers=3.
    N, IN_CH, HID, OUT_CH, NUM_LAYERS = 2048, 32, 32, 1, 3

    key = jax.random.PRNGKey(0)
    key, kxi, kxj, kp = jax.random.split(key, 4)
    x_i = jax.random.normal(kxi, (N, IN_CH), jnp.float32)
    x_j = jax.random.normal(kxj, (N, IN_CH), jnp.float32)
    params = init_params(kp, IN_CH, HID, OUT_CH, NUM_LAYERS)

    out_left = jax.block_until_ready(
        link_predictor_forward(x_i, x_j, params, left=True))
    out_right = jax.block_until_ready(
        link_predictor_forward(x_i, x_j, params, left=False))
    assert out_left.shape == (N,) and out_right.shape == (N,)

    # Tight check vs a reference that mimics the kernel's bf16 MXU operands.
    ref_left_b = _reference_forward_bf16(x_i, x_j, params, left=True)
    ref_right_b = _reference_forward_bf16(x_i, x_j, params, left=False)
    assert jnp.allclose(out_left, ref_left_b, atol=1e-3, rtol=1e-3)
    assert jnp.allclose(out_right, ref_right_b, atol=1e-3, rtol=1e-3)

    # Looser semantic check vs the exact-f32 module reference (bf16 MXU operands
    # are an intentional, documented precision trade-off).
    ref_left = _reference_forward(x_i, x_j, params, left=True)
    ref_right = _reference_forward(x_i, x_j, params, left=False)
    assert jnp.allclose(out_left, ref_left, atol=5e-2, rtol=5e-2)
    assert jnp.allclose(out_right, ref_right, atol=5e-2, rtol=5e-2)

    # Exercise the row-padding / partial-tile path (N not a multiple of pack*8).
    for N2 in (1000, 37):
        out_part = jax.block_until_ready(
            link_predictor_forward(x_i[:N2], x_j[:N2], params, left=True))
        ref_part = _reference_forward_bf16(x_i[:N2], x_j[:N2], params, left=True)
        assert out_part.shape == (N2,)
        assert jnp.allclose(out_part, ref_part, atol=1e-3, rtol=1e-3)

    print("KERNEL_OK")
</pallas_src>

<mosaic_0001>
module attributes {stable_mosaic.version = 11 : i64} {
  func.func @kernel(%arg0: i32, %arg1: memref<128x256xf32, #tpu.memory_space<vmem>>, %arg2: memref<128x256xf32, #tpu.memory_space<vmem>>, %arg3: memref<256x256xbf16, #tpu.memory_space<vmem>>, %arg4: memref<1x256xf32, #tpu.memory_space<vmem>>, %arg5: memref<256x256xbf16, #tpu.memory_space<vmem>>, %arg6: memref<1x256xf32, #tpu.memory_space<vmem>>, %arg7: memref<256x8xbf16, #tpu.memory_space<vmem>>, %arg8: memref<1x8xf32, #tpu.memory_space<vmem>>, %arg9: memref<128x8xf32, #tpu.memory_space<vmem>>) attributes {dimension_semantics = [#tpu.dimension_semantics<parallel>], iteration_bounds = array<i64: 2>, scalar_prefetch = 0 : i64, scratch_operands = 0 : i64, tpu.core_type = #tpu.core_type<tc>, window_params = [{transform_indices = @transform_0, window_bounds = array<i64: 128, 256>}, {transform_indices = @transform_1, window_bounds = array<i64: 128, 256>}, {pipeline_mode = #tpu.pipeline_mode<synchronous>, transform_indices = @transform_2, window_bounds = array<i64: 256, 256>}, {pipeline_mode = #tpu.pipeline_mode<synchronous>, transform_indices = @transform_3, window_bounds = array<i64: 1, 256>}, {pipeline_mode = #tpu.pipeline_mode<synchronous>, transform_indices = @transform_4, window_bounds = array<i64: 256, 256>}, {pipeline_mode = #tpu.pipeline_mode<synchronous>, transform_indices = @transform_5, window_bounds = array<i64: 1, 256>}, {pipeline_mode = #tpu.pipeline_mode<synchronous>, transform_indices = @transform_6, window_bounds = array<i64: 256, 8>}, {pipeline_mode = #tpu.pipeline_mode<synchronous>, transform_indices = @transform_7, window_bounds = array<i64: 1, 8>}, {transform_indices = @transform_8, window_bounds = array<i64: 128, 8>}]} {
    %c0 = arith.constant 0 : index
    %c0_0 = arith.constant 0 : index
    %0 = vector.load %arg1[%c0, %c0_0] : memref<128x256xf32, #tpu.memory_space<vmem>>, vector<128x256xf32>
    %c0_1 = arith.constant 0 : index
    %c0_2 = arith.constant 0 : index
    %1 = vector.load %arg2[%c0_1, %c0_2] : memref<128x256xf32, #tpu.memory_space<vmem>>, vector<128x256xf32>
    %2 = arith.mulf %0, %1 : vector<128x256xf32>
    %3 = arith.truncf %2 : vector<128x256xf32> to vector<128x256xbf16>
    %c0_3 = arith.constant 0 : index
    %c0_4 = arith.constant 0 : index
    %4 = vector.load %arg3[%c0_3, %c0_4] : memref<256x256xbf16, #tpu.memory_space<vmem>>, vector<256x256xbf16>
    %cst = arith.constant dense<0.000000e+00> : vector<128x256xf32>
    %5 = tpu.matmul %3, %4, %cst {dimension_numbers = #tpu.dot_dimension_numbers<[1], [0], [0], [1], [0, 0, 1, 1], [], []>} : vector<128x256xbf16>, vector<256x256xbf16>, vector<128x256xf32> -> vector<128x256xf32>
    %c0_5 = arith.constant 0 : index
    %c0_6 = arith.constant 0 : index
    %6 = vector.load %arg4[%c0_5, %c0_6] : memref<1x256xf32, #tpu.memory_space<vmem>>, vector<1x256xf32>
    %7 = vector.broadcast %6 : vector<1x256xf32> to vector<128x256xf32>
    %8 = arith.addf %5, %7 : vector<128x256xf32>
    %cst_7 = arith.constant 0.000000e+00 : f32
    %9 = vector.broadcast %cst_7 : f32 to vector<128x256xf32>
    %10 = arith.maximumf %8, %9 : vector<128x256xf32>
    %11 = arith.truncf %10 : vector<128x256xf32> to vector<128x256xbf16>
    %c0_8 = arith.constant 0 : index
    %c0_9 = arith.constant 0 : index
    %12 = vector.load %arg5[%c0_8, %c0_9] : memref<256x256xbf16, #tpu.memory_space<vmem>>, vector<256x256xbf16>
    %cst_10 = arith.constant dense<0.000000e+00> : vector<128x256xf32>
    %13 = tpu.matmul %11, %12, %cst_10 {dimension_numbers = #tpu.dot_dimension_numbers<[1], [0], [0], [1], [0, 0, 1, 1], [], []>} : vector<128x256xbf16>, vector<256x256xbf16>, vector<128x256xf32> -> vector<128x256xf32>
    %c0_11 = arith.constant 0 : index
    %c0_12 = arith.constant 0 : index
    %14 = vector.load %arg6[%c0_11, %c0_12] : memref<1x256xf32, #tpu.memory_space<vmem>>, vector<1x256xf32>
    %15 = vector.broadcast %14 : vector<1x256xf32> to vector<128x256xf32>
    %16 = arith.addf %13, %15 : vector<128x256xf32>
    %cst_13 = arith.constant 0.000000e+00 : f32
    %17 = vector.broadcast %cst_13 : f32 to vector<128x256xf32>
    %18 = arith.maximumf %16, %17 : vector<128x256xf32>
    %19 = arith.truncf %18 : vector<128x256xf32> to vector<128x256xbf16>
    %c0_14 = arith.constant 0 : index
    %c0_15 = arith.constant 0 : index
    %20 = vector.load %arg7[%c0_14, %c0_15] : memref<256x8xbf16, #tpu.memory_space<vmem>>, vector<256x8xbf16>
    %cst_16 = arith.constant dense<0.000000e+00> : vector<128x8xf32>
    %21 = tpu.matmul %19, %20, %cst_16 {dimension_numbers = #tpu.dot_dimension_numbers<[1], [0], [0], [1], [0, 0, 1, 1], [], []>} : vector<128x256xbf16>, vector<256x8xbf16>, vector<128x8xf32> -> vector<128x8xf32>
    %c0_17 = arith.constant 0 : index
    %c0_18 = arith.constant 0 : index
    %22 = vector.load %arg8[%c0_17, %c0_18] : memref<1x8xf32, #tpu.memory_space<vmem>>, vector<1x8xf32>
    %23 = vector.broadcast %22 : vector<1x8xf32> to vector<128x8xf32>
    %24 = arith.addf %21, %23 : vector<128x8xf32>
    %c0_19 = arith.constant 0 : index
    %c0_20 = arith.constant 0 : index
    %25 = vector.load %arg9[%c0_19, %c0_20] : memref<128x8xf32, #tpu.memory_space<vmem>>, vector<128x8xf32>
    tpu.vector_store %arg9[%c0_19, %c0_20], %24 {strides = array<i32>} : memref<128x8xf32, #tpu.memory_space<vmem>>, vector<128x8xf32>,
    return
  }
  func.func @transform_0(%arg0: i32) -> (i32, i32) {
    %c0_i32 = arith.constant 0 : i32
    %c0_i32_0 = arith.constant 0 : i32
    return %arg0, %c0_i32 : i32, i32
  }
  func.func @transform_1(%arg0: i32) -> (i32, i32) {
    %c0_i32 = arith.constant 0 : i32
    %c0_i32_0 = arith.constant 0 : i32
    return %arg0, %c0_i32 : i32, i32
  }
  func.func @transform_2(%arg0: i32) -> (i32, i32) {
    %c0_i32 = arith.constant 0 : i32
    %c0_i32_0 = arith.constant 0 : i32
    %c0_i32_1 = arith.constant 0 : i32
    return %c0_i32, %c0_i32_0 : i32, i32
  }
  func.func @transform_3(%arg0: i32) -> (i32, i32) {
    %c0_i32 = arith.constant 0 : i32
    %c0_i32_0 = arith.constant 0 : i32
    %c0_i32_1 = arith.constant 0 : i32
    return %c0_i32, %c0_i32_0 : i32, i32
  }
  func.func @transform_4(%arg0: i32) -> (i32, i32) {
    %c0_i32 = arith.constant 0 : i32
    %c0_i32_0 = arith.constant 0 : i32
    %c0_i32_1 = arith.constant 0 : i32
    return %c0_i32, %c0_i32_0 : i32, i32
  }
  func.func @transform_5(%arg0: i32) -> (i32, i32) {
    %c0_i32 = arith.constant 0 : i32
    %c0_i32_0 = arith.constant 0 : i32
    %c0_i32_1 = arith.constant 0 : i32
    return %c0_i32, %c0_i32_0 : i32, i32
  }
  func.func @transform_6(%arg0: i32) -> (i32, i32) {
    %c0_i32 = arith.constant 0 : i32
    %c0_i32_0 = arith.constant 0 : i32
    %c0_i32_1 = arith.constant 0 : i32
    return %c0_i32, %c0_i32_0 : i32, i32
  }
  func.func @transform_7(%arg0: i32) -> (i32, i32) {
    %c0_i32 = arith.constant 0 : i32
    %c0_i32_0 = arith.constant 0 : i32
    %c0_i32_1 = arith.constant 0 : i32
    return %c0_i32, %c0_i32_0 : i32, i32
  }
  func.func @transform_8(%arg0: i32) -> (i32, i32) {
    %c0_i32 = arith.constant 0 : i32
    %c0_i32_0 = arith.constant 0 : i32
    return %arg0, %c0_i32 : i32, i32
  }
}

</mosaic_0001>

<llo_original>
// kernel: tpu_custom_call.1
$region0: #{tpu_custom_call.1}
  #allocation0 [shape = 'u32[]', space=smem, size = 0x4, offset = 0x4, fixed_abs, tag = 'smem constant byte address 0x4 - core index']
  #allocation1 [shape = 'u32[144,128]{1,0:T(1,128)}', space=vmem, size = 0x12000, scoped, tag = 'internal scratch']
  %s0 = inlined_call_operand.hbm [shape: f32[256,256], index: 0, kind: input, shape index: {}]
  %s1 = inlined_call_operand.hbm [shape: f32[256,256], index: 1, kind: input, shape index: {}]
  %s2 = inlined_call_operand.hbm [shape: bf16[256,256], index: 2, kind: input, shape index: {}]
  %s3 = inlined_call_operand.vmem [shape: f32[1,256], index: 3, kind: input, shape index: {}]
  %s4 = inlined_call_operand.hbm [shape: bf16[256,256], index: 4, kind: input, shape index: {}]
  %s5 = inlined_call_operand.vmem [shape: f32[1,256], index: 5, kind: input, shape index: {}]
  %s6 = inlined_call_operand.vmem [shape: bf16[256,8], index: 6, kind: input, shape index: {}]
  %s7 = inlined_call_operand.vmem [shape: f32[1,8], index: 7, kind: input, shape index: {}]
  %s8 = inlined_call_operand.vmem [shape: f32[256,8], index: 8, kind: output, shape index: {}]
  %s9 = sld [smem:[#allocation0]]
  $region81: #{tpu_custom_call.1} parent=0
    _
  %s11 = ssub.s32 1, %s9
  %s12 = scalar_select 0, %s11, %s9
  $region1: #{tpu_custom_call.1} parent=0
    #allocation2 [shape = 'u8[262144]{0}', space=vmem, size = 0x40000, scoped, tag = 'input window, operand 0']
    #allocation3 [shape = 's32[2]{0}', space=sflag, size = 0x8, scoped, tag = 'scoped memory for tpu_custom_call.1']
    #allocation4 [shape = 'u8[262144]{0}', space=vmem, size = 0x40000, scoped, tag = 'input window, operand 1']
    #allocation5 [shape = 's32[2]{0}', space=sflag, size = 0x8, scoped, tag = 'scoped memory for tpu_custom_call.1']
    #allocation6 [shape = 'u8[131072]{0}', space=vmem, size = 0x20000, scoped, tag = 'input window, operand 2, single buffered']
    #allocation7 [shape = 'u8[131072]{0}', space=vmem, size = 0x20000, scoped, tag = 'input window, operand 4, single buffered']
    #allocation8 [shape = 's32[1]{0}', space=sflag, size = 0x4, scoped, tag = 'scoped memory for tpu_custom_call.1']
    %13 = vsyncpa [#allocation3], 0
    %s14 = scalar_lea.sflag [#allocation3], 1
    %15 = vsyncpa %s14, 0
    %16 = vsyncpa [#allocation5], 0
    %s17 = scalar_lea.sflag [#allocation5], 1
    %18 = vsyncpa %s17, 0
    %19 = vsyncpa [#allocation8], 0
    loop: start=0, step=1, limit=4
    $region2: #{tpu_custom_call.1} parent=1 // loop_pre_header
      _
    $region3: #{tpu_custom_call.1} parent=1 // loop_header
      %s21 = sphi 0, %s25
      %p22 = scmp.ge.s32.totalorder %s21, 4
      %s31 = sphi 0, %s33
      %s34 = sphi 0, %s31
      %s35 = sphi 0, %s34
      %s51 = sphi 0, %s35
      %s57 = sphi 0, %s59
      %s60 = sphi 0, %s57
      %s61 = sphi 0, %s60
      %s77 = sphi 0, %s61
      %s81 = sphi 0, %s81
      %s83 = sphi 0, %s81
      %s84 = sphi 0, %s83
      %s98 = sphi 0, %s84
      %s102 = sphi 0, %s102
      %s104 = sphi 0, %s102
      %s105 = sphi 0, %s104
      %s119 = sphi 0, %s105
      %s123 = sphi 0, %s123
      %s125 = sphi 0, %s123
      %s126 = sphi 0, %s125
      %s140 = sphi 0, %s126
      %s144 = sphi 0, %s144
      %s146 = sphi 0, %s144
      %s147 = sphi 0, %s146
      %s161 = sphi 0, %s147
      %s165 = sphi 0, %s165
      %s167 = sphi 0, %s165
      %s168 = sphi 0, %s167
      %s182 = sphi 0, %s168
      %s186 = sphi 0, %s186
      %s188 = sphi 0, %s186
      %s189 = sphi 0, %s188
      %s203 = sphi 0, %s189
      %s209 = sphi 0, %s211
      %s212 = sphi 0, %s209
      %s213 = sphi 0, %s212
      %s229 = sphi 0, %s213
    $region4: #{tpu_custom_call.1} parent=1 // loop_header_branch
      %24 = sbr.rel (%p22) target = $region8
    $region5: #{tpu_custom_call.1} parent=1 // loop_body
      %s26 = ssub.s32 %s21, 1
      %s27 = ssub.s32 %s21, 2
      %s28 = sadd.s32 %s21, 1
      %s29 = ssub.s32 %s21, %s28
      %p30 = scmp.eq.s32.totalorder %s29, 0
      %s32 = sadd.s32 %s31, 1
      %s33 = scalar_select %p30, %s31, %s32
      %p36 = pneg %p30
      %p37 = scmp.eq.s32.totalorder %s21, 1
      %p38 = por %p36, %p37
      %p39 = scmp.ne.s32.totalorder %s31, %s34
      %p40 = scmp.eq.s32.totalorder %s21, 0
      %p41 = por %p39, %p40
      %p42 = scmp.ne.s32.totalorder %s31, %s34
      %p43 = scmp.eq.s32.totalorder %s26, 1
      %p44 = por %p42, %p43
      %p45 = scmp.ne.s32.totalorder %s34, %s35
      %p46 = scmp.eq.s32.totalorder %s26, 0
      %p47 = por %p45, %p46
      %p48 = scmp.ne.s32.totalorder %s34, %s35
      %p49 = scmp.eq.s32.totalorder %s27, 1
      %p50 = por %p48, %p49
      %p52 = scmp.ne.s32.totalorder %s35, %s51
      %p53 = scmp.eq.s32.totalorder %s27, 0
      %p54 = por %p52, %p53
      %s55 = ssub.s32 %s21, %s28
      %p56 = scmp.eq.s32.totalorder %s55, 0
      %s58 = sadd.s32 %s57, 1
      %s59 = scalar_select %p56, %s57, %s58
      %p62 = pneg %p56
      %p63 = scmp.eq.s32.totalorder %s21, 1
      %p64 = por %p62, %p63
      %p65 = scmp.ne.s32.totalorder %s57, %s60
      %p66 = scmp.eq.s32.totalorder %s21, 0
      %p67 = por %p65, %p66
      %p68 = scmp.ne.s32.totalorder %s57, %s60
      %p69 = scmp.eq.s32.totalorder %s26, 1
      %p70 = por %p68, %p69
      %p71 = scmp.ne.s32.totalorder %s60, %s61
      %p72 = scmp.eq.s32.totalorder %s26, 0
      %p73 = por %p71, %p72
      %p74 = scmp.ne.s32.totalorder %s60, %s61
      %p75 = scmp.eq.s32.totalorder %s27, 1
      %p76 = por %p74, %p75
      %p78 = scmp.ne.s32.totalorder %s61, %s77
      %p79 = scmp.eq.s32.totalorder %s27, 0
      %p80 = por %p78, %p79
      %s82 = sadd.s32 %s81, 1
      %p85 = scmp.eq.s32.totalorder %s21, 1
      %p86 = scmp.ne.s32.totalorder %s81, %s83
      %p87 = scmp.eq.s32.totalorder %s21, 0
      %p88 = por %p86, %p87
      %p89 = scmp.ne.s32.totalorder %s81, %s83
      %p90 = scmp.eq.s32.totalorder %s26, 1
      %p91 = por %p89, %p90
      %p92 = scmp.ne.s32.totalorder %s83, %s84
      %p93 = scmp.eq.s32.totalorder %s26, 0
      %p94 = por %p92, %p93
      %p95 = scmp.ne.s32.totalorder %s83, %s84
      %p96 = scmp.eq.s32.totalorder %s27, 1
      %p97 = por %p95, %p96
      %p99 = scmp.ne.s32.totalorder %s84, %s98
      %p100 = scmp.eq.s32.totalorder %s27, 0
      %p101 = por %p99, %p100
      %s103 = sadd.s32 %s102, 1
      %p106 = scmp.eq.s32.totalorder %s21, 1
      %p107 = scmp.ne.s32.totalorder %s102, %s104
      %p108 = scmp.eq.s32.totalorder %s21, 0
      %p109 = por %p107, %p108
      %p110 = scmp.ne.s32.totalorder %s102, %s104
      %p111 = scmp.eq.s32.totalorder %s26, 1
      %p112 = por %p110, %p111
      %p113 = scmp.ne.s32.totalorder %s104, %s105
      %p114 = scmp.eq.s32.totalorder %s26, 0
      %p115 = por %p113, %p114
      %p116 = scmp.ne.s32.totalorder %s104, %s105
      %p117 = scmp.eq.s32.totalorder %s27, 1
      %p118 = por %p116, %p117
      %p120 = scmp.ne.s32.totalorder %s105, %s119
      %p121 = scmp.eq.s32.totalorder %s27, 0
      %p122 = por %p120, %p121
      %s124 = sadd.s32 %s123, 1
      %p127 = scmp.eq.s32.totalorder %s21, 1
      %p128 = scmp.ne.s32.totalorder %s123, %s125
      %p129 = scmp.eq.s32.totalorder %s21, 0
      %p130 = por %p128, %p129
      %p131 = scmp.ne.s32.totalorder %s123, %s125
      %p132 = scmp.eq.s32.totalorder %s26, 1
      %p133 = por %p131, %p132
      %p134 = scmp.ne.s32.totalorder %s125, %s126
      %p135 = scmp.eq.s32.totalorder %s26, 0
      %p136 = por %p134, %p135
      %p137 = scmp.ne.s32.totalorder %s125, %s126
      %p138 = scmp.eq.s32.totalorder %s27, 1
      %p139 = por %p137, %p138
      %p141 = scmp.ne.s32.totalorder %s126, %s140
      %p142 = scmp.eq.s32.totalorder %s27, 0
      %p143 = por %p141, %p142
      %s145 = sadd.s32 %s144, 1
      %p148 = scmp.eq.s32.totalorder %s21, 1
      %p149 = scmp.ne.s32.totalorder %s144, %s146
      %p150 = scmp.eq.s32.totalorder %s21, 0
      %p151 = por %p149, %p150
      %p152 = scmp.ne.s32.totalorder %s144, %s146
      %p153 = scmp.eq.s32.totalorder %s26, 1
      %p154 = por %p152, %p153
      %p155 = scmp.ne.s32.totalorder %s146, %s147
      %p156 = scmp.eq.s32.totalorder %s26, 0
      %p157 = por %p155, %p156
      %p158 = scmp.ne.s32.totalorder %s146, %s147
      %p159 = scmp.eq.s32.totalorder %s27, 1
      %p160 = por %p158, %p159
      %p162 = scmp.ne.s32.totalorder %s147, %s161
      %p163 = scmp.eq.s32.totalorder %s27, 0
      %p164 = por %p162, %p163
      %s166 = sadd.s32 %s165, 1
      %p169 = scmp.eq.s32.totalorder %s21, 1
      %p170 = scmp.ne.s32.totalorder %s165, %s167
      %p171 = scmp.eq.s32.totalorder %s21, 0
      %p172 = por %p170, %p171
      %p173 = scmp.ne.s32.totalorder %s165, %s167
      %p174 = scmp.eq.s32.totalorder %s26, 1
      %p175 = por %p173, %p174
      %p176 = scmp.ne.s32.totalorder %s167, %s168
      %p177 = scmp.eq.s32.totalorder %s26, 0
      %p178 = por %p176, %p177
      %p179 = scmp.ne.s32.totalorder %s167, %s168
      %p180 = scmp.eq.s32.totalorder %s27, 1
      %p181 = por %p179, %p180
      %p183 = scmp.ne.s32.totalorder %s168, %s182
      %p184 = scmp.eq.s32.totalorder %s27, 0
      %p185 = por %p183, %p184
      %s187 = sadd.s32 %s186, 1
      %p190 = scmp.eq.s32.totalorder %s21, 1
      %p191 = scmp.ne.s32.totalorder %s186, %s188
      %p192 = scmp.eq.s32.totalorder %s21, 0
      %p193 = por %p191, %p192
      %p194 = scmp.ne.s32.totalorder %s186, %s188
      %p195 = scmp.eq.s32.totalorder %s26, 1
      %p196 = por %p194, %p195
      %p197 = scmp.ne.s32.totalorder %s188, %s189
      %p198 = scmp.eq.s32.totalorder %s26, 0
      %p199 = por %p197, %p198
      %p200 = scmp.ne.s32.totalorder %s188, %s189
      %p201 = scmp.eq.s32.totalorder %s27, 1
      %p202 = por %p200, %p201
      %p204 = scmp.ne.s32.totalorder %s189, %s203
      %p205 = scmp.eq.s32.totalorder %s27, 0
      %p206 = por %p204, %p205
      %s207 = ssub.s32 %s21, %s28
      %p208 = scmp.eq.s32.totalorder %s207, 0
      %s210 = sadd.s32 %s209, 1
      %s211 = scalar_select %p208, %s209, %s210
      %p214 = pneg %p208
      %p215 = scmp.eq.s32.totalorder %s21, 1
      %p216 = por %p214, %p215
      %p217 = scmp.ne.s32.totalorder %s209, %s212
      %p218 = scmp.eq.s32.totalorder %s21, 0
      %p219 = por %p217, %p218
      %p220 = scmp.ne.s32.totalorder %s209, %s212
      %p221 = scmp.eq.s32.totalorder %s26, 1
      %p222 = por %p220, %p221
      %p223 = scmp.ne.s32.totalorder %s212, %s213
      %p224 = scmp.eq.s32.totalorder %s26, 0
      %p225 = por %p223, %p224
      %p226 = scmp.ne.s32.totalorder %s212, %s213
      %p227 = scmp.eq.s32.totalorder %s27, 1
      %p228 = por %p226, %p227
      %p230 = scmp.ne.s32.totalorder %s213, %s229
      %p231 = scmp.eq.s32.totalorder %s27, 0
      %p232 = por %p230, %p231
      %p233 = scmp.le.s32.totalorder 1, %s21
      %p234 = scmp.lt.s32.totalorder %s21, 3
      %p235 = pnand %p233, %p234
      %p236 = pneg %p235
      // Predicated region
      $region9: #{tpu_custom_call.1} parent=5 // pred_check
        _
      $region10: #{tpu_custom_call.1} parent=5 // pred_check_branch
        %238 = sbr.rel (%p235) target = $region12
      $region11: #{tpu_custom_call.1} parent=5 // pred_region
        %s239 = ssub.s32 %s21, 1
        // Predicated region
        $region13: #{tpu_custom_call.1} parent=11 // pred_check
          %p240 = pneg %p94
        $region14: #{tpu_custom_call.1} parent=11 // pred_check_branch
          %242 = sbr.rel (%p240) target = $region16
        $region15: #{tpu_custom_call.1} parent=11 // pred_region
          %s244 = ssub.s32 4096, 4096
          %245 = vsyncadd [#allocation5], %s244
          %s246 = sshll.u32 [#allocation6], 4
          %s247 = int_to_ptr.vmem [resolvable:$true] %s246
          %252 = dma.hbm_to_vmem [thread:$0]  %s2, 4096, %s247, [#allocation5], 128, 128, 8
        $region16: #{tpu_custom_call.1} parent=11 // pred_fallthru
          _
        // Predicated region
        $region17: #{tpu_custom_call.1} parent=11 // pred_check
          %p253 = pneg %p115
        $region18: #{tpu_custom_call.1} parent=11 // pred_check_branch
          %255 = sbr.rel (%p253) target = $region20
        $region19: #{tpu_custom_call.1} parent=11 // pred_region
          _
        $region20: #{tpu_custom_call.1} parent=11 // pred_fallthru
          _
        // Predicated region
        $region21: #{tpu_custom_call.1} parent=11 // pred_check
          %p256 = pneg %p136
        $region22: #{tpu_custom_call.1} parent=11 // pred_check_branch
          %258 = sbr.rel (%p256) target = $region24
        $region23: #{tpu_custom_call.1} parent=11 // pred_region
          %s260 = ssub.s32 4096, 4096
          %261 = vsyncadd [#allocation8], %s260
          %s262 = sshll.u32 [#allocation7], 4
          %s263 = int_to_ptr.vmem [resolvable:$true] %s262
          %268 = dma.hbm_to_vmem [thread:$0]  %s4, 4096, %s263, [#allocation8], 128, 128, 8
        $region24: #{tpu_custom_call.1} parent=11 // pred_fallthru
          _
        // Predicated region
        $region25: #{tpu_custom_call.1} parent=11 // pred_check
          %p269 = pneg %p157
        $region26: #{tpu_custom_call.1} parent=11 // pred_check_branch
          %271 = sbr.rel (%p269) target = $region28
        $region27: #{tpu_custom_call.1} parent=11 // pred_region
          _
        $region28: #{tpu_custom_call.1} parent=11 // pred_fallthru
          _
        // Predicated region
        $region29: #{tpu_custom_call.1} parent=11 // pred_check
          %p272 = pneg %p178
        $region30: #{tpu_custom_call.1} parent=11 // pred_check_branch
          %274 = sbr.rel (%p272) target = $region32
        $region31: #{tpu_custom_call.1} parent=11 // pred_region
          _
        $region32: #{tpu_custom_call.1} parent=11 // pred_fallthru
          _
        // Predicated region
        $region33: #{tpu_custom_call.1} parent=11 // pred_check
          %p275 = pneg %p199
        $region34: #{tpu_custom_call.1} parent=11 // pred_check_branch
          %277 = sbr.rel (%p275) target = $region36
        $region35: #{tpu_custom_call.1} parent=11 // pred_region
          _
        $region36: #{tpu_custom_call.1} parent=11 // pred_fallthru
          _
      $region12: #{tpu_custom_call.1} parent=5 // pred_fallthru
        _
      %p278 = scmp.lt.s32.totalorder %s21, 2
      // Predicated region
      $region37: #{tpu_custom_call.1} parent=5 // pred_check
        %p279 = pneg %p278
      $region38: #{tpu_custom_call.1} parent=5 // pred_check_branch
        %281 = sbr.rel (%p279) target = $region40
      $region39: #{tpu_custom_call.1} parent=5 // pred_region
        // Predicated region
        $region41: #{tpu_custom_call.1} parent=39 // pred_check
          %p282 = pneg %p41
        $region42: #{tpu_custom_call.1} parent=39 // pred_check_branch
          %284 = sbr.rel (%p282) target = $region44
        $region43: #{tpu_custom_call.1} parent=39 // pred_region
          %s285 = sand.u32 %s31, 1
          %s286 = scalar_lea.sflag [#allocation3], %s285
          %s287 = sand.u32 %s31, 1
          %s288 = smul.addr %s287, 256
          %s289 = scalar_lea.vmem [#allocation2], %s288
          %s290 = smul.u32 16, %s21
          %s292 = ssub.s32 4096, 4096
          %293 = vsyncadd %s286, %s292
          %s294 = smul.addr %s290, 2
          %s295 = smul.addr %s294, 128
          %s296 = scalar_lea.hbm %s0, %s295
          %s297 = sshll.u32 %s289, 4
          %s298 = int_to_ptr.vmem [resolvable:$true] %s297
          %303 = dma.hbm_to_vmem [thread:$0]  %s296, 4096, %s298, %s286, 256, 256, 16
        $region44: #{tpu_custom_call.1} parent=39 // pred_fallthru
          _
        // Predicated region
        $region45: #{tpu_custom_call.1} parent=39 // pred_check
          %p304 = pneg %p67
        $region46: #{tpu_custom_call.1} parent=39 // pred_check_branch
          %306 = sbr.rel (%p304) target = $region48
        $region47: #{tpu_custom_call.1} parent=39 // pred_region
          %s307 = sand.u32 %s21, 1
          %s308 = scalar_lea.sflag [#allocation5], %s307
          %s309 = sand.u32 %s57, 1
          %s310 = smul.addr %s309, 256
          %s311 = scalar_lea.vmem [#allocation4], %s310
          %s312 = smul.u32 16, %s21
          %s314 = ssub.s32 4096, 4096
          %315 = vsyncadd %s308, %s314
          %s316 = smul.addr %s312, 2
          %s317 = smul.addr %s316, 128
          %s318 = scalar_lea.hbm %s1, %s317
          %s319 = sshll.u32 %s311, 4
          %s320 = int_to_ptr.vmem [resolvable:$true] %s319
          %325 = dma.hbm_to_vmem [thread:$0]  %s318, 4096, %s320, %s308, 256, 256, 16
        $region48: #{tpu_custom_call.1} parent=39 // pred_fallthru
          _
      $region40: #{tpu_custom_call.1} parent=5 // pred_fallthru
        _
      %p326 = scmp.le.s32.totalorder 1, %s21
      %p327 = scmp.lt.s32.totalorder %s21, 3
      %p328 = pnand %p326, %p327
      %p329 = pneg %p328
      // Predicated region
      $region49: #{tpu_custom_call.1} parent=5 // pred_check
        _
      $region50: #{tpu_custom_call.1} parent=5 // pred_check_branch
        %331 = sbr.rel (%p328) target = $region52
      $region51: #{tpu_custom_call.1} parent=5 // pred_region
        %s332 = ssub.s32 %s21, 1
        %s333 = sand.u32 %s34, 1
        %s334 = scalar_lea.sflag [#allocation3], %s333
        %s335 = sand.u32 %s34, 1
        %s336 = smul.addr %s335, 256
        %s337 = scalar_lea.vmem [#allocation2], %s336
        // Predicated region
        $region53: #{tpu_custom_call.1} parent=51 // pred_check
          %p338 = pneg %p47
        $region54: #{tpu_custom_call.1} parent=51 // pred_check_branch
          %340 = sbr.rel (%p338) target = $region56
        $region55: #{tpu_custom_call.1} parent=51 // pred_region
          %341 = dma.done %s334, 4096
        $region56: #{tpu_custom_call.1} parent=51 // pred_fallthru
          _
        %s342 = sand.u32 %s26, 1
        %s343 = scalar_lea.sflag [#allocation5], %s342
        %s344 = sand.u32 %s60, 1
        %s345 = smul.addr %s344, 256
        %s346 = scalar_lea.vmem [#allocation4], %s345
        // Predicated region
        $region57: #{tpu_custom_call.1} parent=51 // pred_check
          %p347 = pneg %p73
        $region58: #{tpu_custom_call.1} parent=51 // pred_check_branch
          %349 = sbr.rel (%p347) target = $region60
        $region59: #{tpu_custom_call.1} parent=51 // pred_region
          %350 = dma.done %s343, 4096
        $region60: #{tpu_custom_call.1} parent=51 // pred_fallthru
          _
        // Predicated region
        $region61: #{tpu_custom_call.1} parent=51 // pred_check
          %p351 = pneg %p94
        $region62: #{tpu_custom_call.1} parent=51 // pred_check_branch
          %353 = sbr.rel (%p351) target = $region64
        $region63: #{tpu_custom_call.1} parent=51 // pred_region
          %354 = dma.done [#allocation5], 4096
        $region64: #{tpu_custom_call.1} parent=51 // pred_fallthru
          _
        // Predicated region
        $region65: #{tpu_custom_call.1} parent=51 // pred_check
          %p355 = pneg %p136
        $region66: #{tpu_custom_call.1} parent=51 // pred_check_branch
          %357 = sbr.rel (%p355) target = $region68
        $region67: #{tpu_custom_call.1} parent=51 // pred_region
          %358 = dma.done [#allocation8], 4096
        $region68: #{tpu_custom_call.1} parent=51 // pred_fallthru
          _
        %s359 = sand.u32 %s34, 1
        %s360 = scalar_lea.sflag [#allocation3], %s359
        %s361 = sand.u32 %s34, 1
        %s362 = smul.addr %s361, 256
        %s363 = scalar_lea.vmem [#allocation2], %s362
        %p364 = pneg %p47
        %p365 = pneg %p44
        %s366 = sand.u32 %s26, 1
        %s367 = scalar_lea.sflag [#allocation5], %s366
        %s368 = sand.u32 %s60, 1
        %s369 = smul.addr %s368, 256
        %s370 = scalar_lea.vmem [#allocation4], %s369
        %p371 = pneg %p73
        %p372 = pneg %p70
        %p373 = pneg %p94
        %p374 = pneg %p91
        %p375 = pneg %p115
        %p376 = pneg %p112
        %p377 = pneg %p136
        %p378 = pneg %p133
        %p379 = pneg %p157
        %p380 = pneg %p154
        %p381 = pneg %p178
        %p382 = pneg %p175
        %p383 = pneg %p199
        %p384 = pneg %p196
        %p385 = pneg %p225
        %p386 = pneg %p222
        %s387 = smul.u32 16, %s26
        %p388 = scmp.lt.s32.totalorder %s387, 31
        %s389 = scalar_select %p388, %s387, 31
        %s390 = smul.addr %s389, 8
        %s391 = scalar_lea.vmem %s8, %s390
        %s392 = smul.u32 16, %s26
        %s393 = smul.u32 16, %s26
        %s394 = smul.u32 16, %s26
        %p395 = scmp.lt.s32.totalorder %s394, 31
        %s396 = scalar_select %p395, %s394, 31
        %s397 = smul.addr %s396, 8
        %s398 = scalar_lea.vmem %s8, %s397
        %s399 = smul.u32 16, %s26
        %v401 = vld [vmem:[%s337] sm:$0xff]
        %v402 = vld [vmem:[%s337 + $0x8] sm:$0xff]
        %v403 = vld [vmem:[%s337 + $0x10] sm:$0xff]
        %v404 = vld [vmem:[%s337 + $0x18] sm:$0xff]
        %v405 = vld [vmem:[%s337 + $0x20] sm:$0xff]
        %v406 = vld [vmem:[%s337 + $0x28] sm:$0xff]
        %v407 = vld [vmem:[%s337 + $0x30] sm:$0xff]
        %v408 = vld [vmem:[%s337 + $0x38] sm:$0xff]
        %v409 = vld [vmem:[%s337 + $0x40] sm:$0xff]
        %v410 = vld [vmem:[%s337 + $0x48] sm:$0xff]
        %v411 = vld [vmem:[%s337 + $0x50] sm:$0xff]
        %v412 = vld [vmem:[%s337 + $0x58] sm:$0xff]
        %v413 = vld [vmem:[%s337 + $0x60] sm:$0xff]
        %v414 = vld [vmem:[%s337 + $0x68] sm:$0xff]
        %v415 = vld [vmem:[%s337 + $0x70] sm:$0xff]
        %v416 = vld [vmem:[%s337 + $0x78] sm:$0xff]
        %v417 = vld [vmem:[%s337 + $0x80] sm:$0xff]
        %v418 = vld [vmem:[%s337 + $0x88] sm:$0xff]
        %v419 = vld [vmem:[%s337 + $0x90] sm:$0xff]
        %v420 = vld [vmem:[%s337 + $0x98] sm:$0xff]
        %v421 = vld [vmem:[%s337 + $0xa0] sm:$0xff]
        %v422 = vld [vmem:[%s337 + $0xa8] sm:$0xff]
        %v423 = vld [vmem:[%s337 + $0xb0] sm:$0xff]
        %v424 = vld [vmem:[%s337 + $0xb8] sm:$0xff]
        %v425 = vld [vmem:[%s337 + $0xc0] sm:$0xff]
        %v426 = vld [vmem:[%s337 + $0xc8] sm:$0xff]
        %v427 = vld [vmem:[%s337 + $0xd0] sm:$0xff]
        %v428 = vld [vmem:[%s337 + $0xd8] sm:$0xff]
        %v429 = vld [vmem:[%s337 + $0xe0] sm:$0xff]
        %v430 = vld [vmem:[%s337 + $0xe8] sm:$0xff]
        %v431 = vld [vmem:[%s337 + $0xf0] sm:$0xff]
        %v432 = vld [vmem:[%s337 + $0xf8] sm:$0xff]
        %v433 = vld [vmem:[%s346] sm:$0xff]
        %v434 = vld [vmem:[%s346 + $0x8] sm:$0xff]
        %v435 = vld [vmem:[%s346 + $0x10] sm:$0xff]
        %v436 = vld [vmem:[%s346 + $0x18] sm:$0xff]
        %v437 = vld [vmem:[%s346 + $0x20] sm:$0xff]
        %v438 = vld [vmem:[%s346 + $0x28] sm:$0xff]
        %v439 = vld [vmem:[%s346 + $0x30] sm:$0xff]
        %v440 = vld [vmem:[%s346 + $0x38] sm:$0xff]
        %v441 = vld [vmem:[%s346 + $0x40] sm:$0xff]
        %v442 = vld [vmem:[%s346 + $0x48] sm:$0xff]
        %v443 = vld [vmem:[%s346 + $0x50] sm:$0xff]
        %v444 = vld [vmem:[%s346 + $0x58] sm:$0xff]
        %v445 = vld [vmem:[%s346 + $0x60] sm:$0xff]
        %v446 = vld [vmem:[%s346 + $0x68] sm:$0xff]
        %v447 = vld [vmem:[%s346 + $0x70] sm:$0xff]
        %v448 = vld [vmem:[%s346 + $0x78] sm:$0xff]
        %v449 = vld [vmem:[%s346 + $0x80] sm:$0xff]
        %v450 = vld [vmem:[%s346 + $0x88] sm:$0xff]
        %v451 = vld [vmem:[%s346 + $0x90] sm:$0xff]
        %v452 = vld [vmem:[%s346 + $0x98] sm:$0xff]
        %v453 = vld [vmem:[%s346 + $0xa0] sm:$0xff]
        %v454 = vld [vmem:[%s346 + $0xa8] sm:$0xff]
        %v455 = vld [vmem:[%s346 + $0xb0] sm:$0xff]
        %v456 = vld [vmem:[%s346 + $0xb8] sm:$0xff]
        %v457 = vld [vmem:[%s346 + $0xc0] sm:$0xff]
        %v458 = vld [vmem:[%s346 + $0xc8] sm:$0xff]
        %v459 = vld [vmem:[%s346 + $0xd0] sm:$0xff]
        %v460 = vld [vmem:[%s346 + $0xd8] sm:$0xff]
        %v461 = vld [vmem:[%s346 + $0xe0] sm:$0xff]
        %v462 = vld [vmem:[%s346 + $0xe8] sm:$0xff]
        %v463 = vld [vmem:[%s346 + $0xf0] sm:$0xff]
        %v464 = vld [vmem:[%s346 + $0xf8] sm:$0xff]
        %v465 = vmul.f32 %v401, %v433
        %v466 = vmul.f32 %v402, %v434
        %v467 = vmul.f32 %v403, %v435
        %v468 = vmul.f32 %v404, %v436
        %v469 = vmul.f32 %v405, %v437
        %v470 = vmul.f32 %v406, %v438
        %v471 = vmul.f32 %v407, %v439
        %v472 = vmul.f32 %v408, %v440
        %v473 = vmul.f32 %v409, %v441
        %v474 = vmul.f32 %v410, %v442
        %v475 = vmul.f32 %v411, %v443
        %v476 = vmul.f32 %v412, %v444
        %v477 = vmul.f32 %v413, %v445
        %v478 = vmul.f32 %v414, %v446
        %v479 = vmul.f32 %v415, %v447
        %v480 = vmul.f32 %v416, %v448
        %v481 = vmul.f32 %v417, %v449
        %v482 = vmul.f32 %v418, %v450
        %v483 = vmul.f32 %v419, %v451
        %v484 = vmul.f32 %v420, %v452
        %v485 = vmul.f32 %v421, %v453
        %v486 = vmul.f32 %v422, %v454
        %v487 = vmul.f32 %v423, %v455
        %v488 = vmul.f32 %v424, %v456
        %v489 = vmul.f32 %v425, %v457
        %v490 = vmul.f32 %v426, %v458
        %v491 = vmul.f32 %v427, %v459
        %v492 = vmul.f32 %v428, %v460
        %v493 = vmul.f32 %v429, %v461
        %v494 = vmul.f32 %v430, %v462
        %v495 = vmul.f32 %v431, %v463
        %v496 = vmul.f32 %v432, %v464
        %v497 = vpack.c.bf16 %v467, %v465
        %v498 = vpack.c.bf16 %v468, %v466
        %v499 = vpack.c.bf16 %v471, %v469
        %v500 = vpack.c.bf16 %v472, %v470
        %v501 = vpack.c.bf16 %v475, %v473
        %v502 = vpack.c.bf16 %v476, %v474
        %v503 = vpack.c.bf16 %v479, %v477
        %v504 = vpack.c.bf16 %v480, %v478
        %v505 = vpack.c.bf16 %v483, %v481
        %v506 = vpack.c.bf16 %v484, %v482
        %v507 = vpack.c.bf16 %v487, %v485
        %v508 = vpack.c.bf16 %v488, %v486
        %v509 = vpack.c.bf16 %v491, %v489
        %v510 = vpack.c.bf16 %v492, %v490
        %v511 = vpack.c.bf16 %v495, %v493
        %v512 = vpack.c.bf16 %v496, %v494
        %v513 = vld [vmem:[#allocation6] sm:$0xff]
        %v514 = vld [vmem:[#allocation6 + $0x8] sm:$0xff]
        %v515 = vld [vmem:[#allocation6 + $0x10] sm:$0xff]
        %v516 = vld [vmem:[#allocation6 + $0x18] sm:$0xff]
        %v517 = vld [vmem:[#allocation6 + $0x20] sm:$0xff]
        %v518 = vld [vmem:[#allocation6 + $0x28] sm:$0xff]
        %v519 = vld [vmem:[#allocation6 + $0x30] sm:$0xff]
        %v520 = vld [vmem:[#allocation6 + $0x38] sm:$0xff]
        %v521 = vld [vmem:[#allocation6 + $0x40] sm:$0xff]
        %v522 = vld [vmem:[#allocation6 + $0x48] sm:$0xff]
        %v523 = vld [vmem:[#allocation6 + $0x50] sm:$0xff]
        %v524 = vld [vmem:[#allocation6 + $0x58] sm:$0xff]
        %v525 = vld [vmem:[#allocation6 + $0x60] sm:$0xff]
        %v526 = vld [vmem:[#allocation6 + $0x68] sm:$0xff]
        %v527 = vld [vmem:[#allocation6 + $0x70] sm:$0xff]
        %v528 = vld [vmem:[#allocation6 + $0x78] sm:$0xff]
        %v529 = vld [vmem:[#allocation6 + $0x80] sm:$0xff]
        %v530 = vld [vmem:[#allocation6 + $0x88] sm:$0xff]
        %v531 = vld [vmem:[#allocation6 + $0x90] sm:$0xff]
        %v532 = vld [vmem:[#allocation6 + $0x98] sm:$0xff]
        %v533 = vld [vmem:[#allocation6 + $0xa0] sm:$0xff]
        %v534 = vld [vmem:[#allocation6 + $0xa8] sm:$0xff]
        %v535 = vld [vmem:[#allocation6 + $0xb0] sm:$0xff]
        %v536 = vld [vmem:[#allocation6 + $0xb8] sm:$0xff]
        %v537 = vld [vmem:[#allocation6 + $0xc0] sm:$0xff]
        %v538 = vld [vmem:[#allocation6 + $0xc8] sm:$0xff]
        %v539 = vld [vmem:[#allocation6 + $0xd0] sm:$0xff]
        %v540 = vld [vmem:[#allocation6 + $0xd8] sm:$0xff]
        %v541 = vld [vmem:[#allocation6 + $0xe0] sm:$0xff]
        %v542 = vld [vmem:[#allocation6 + $0xe8] sm:$0xff]
        %v543 = vld [vmem:[#allocation6 + $0xf0] sm:$0xff]
        %v544 = vld [vmem:[#allocation6 + $0xf8] sm:$0xff]
        %v545 = vld [vmem:[%s3] sm:$0x3]
        %v547 = vlaneseq
        %v548 = vshrl.u32 %v547, 7
        %v549 = vsub.s32 0, %v548
        %v550 = vrot.slane %v545, %v549
        %v551 = vlaneseq
        %v552 = vshrl.u32 %v551, 7
        %v553 = vsub.s32 1, %v552
        %v554 = vrot.slane %v545, %v553
        %v589 = vunpack.c.l.b16 %v513
        %v590 = vunpack.c.h.b16 %v513
        %v591 = vunpack.c.l.b16 %v514
        %v592 = vunpack.c.h.b16 %v514
        %v593 = vunpack.c.l.b16 %v515
        %v594 = vunpack.c.h.b16 %v515
        %v595 = vunpack.c.l.b16 %v516
        %v596 = vunpack.c.h.b16 %v516
        %v597 = vunpack.c.l.b16 %v517
        %v598 = vunpack.c.h.b16 %v517
        %v599 = vunpack.c.l.b16 %v518
        %v600 = vunpack.c.h.b16 %v518
        %v601 = vunpack.c.l.b16 %v519
        %v602 = vunpack.c.h.b16 %v519
        %v603 = vunpack.c.l.b16 %v520
        %v604 = vunpack.c.h.b16 %v520
        %v605 = vunpack.c.l.b16 %v521
        %v606 = vunpack.c.h.b16 %v521
        %v607 = vunpack.c.l.b16 %v522
        %v608 = vunpack.c.h.b16 %v522
        %v609 = vunpack.c.l.b16 %v523
        %v610 = vunpack.c.h.b16 %v523
        %v611 = vunpack.c.l.b16 %v524
        %v612 = vunpack.c.h.b16 %v524
        %v613 = vunpack.c.l.b16 %v525
        %v614 = vunpack.c.h.b16 %v525
        %v615 = vunpack.c.l.b16 %v526
        %v616 = vunpack.c.h.b16 %v526
        %v617 = vunpack.c.l.b16 %v527
        %v618 = vunpack.c.h.b16 %v527
        %v619 = vunpack.c.l.b16 %v528
        %v620 = vunpack.c.h.b16 %v528
        %v621 = vunpack.c.l.b16 %v529
        %v622 = vunpack.c.h.b16 %v529
        %v623 = vunpack.c.l.b16 %v530
        %v624 = vunpack.c.h.b16 %v530
        %v625 = vunpack.c.l.b16 %v531
        %v626 = vunpack.c.h.b16 %v531
        %v627 = vunpack.c.l.b16 %v532
        %v628 = vunpack.c.h.b16 %v532
        %v629 = vunpack.c.l.b16 %v533
        %v630 = vunpack.c.h.b16 %v533
        %v631 = vunpack.c.l.b16 %v534
        %v632 = vunpack.c.h.b16 %v534
        %v633 = vunpack.c.l.b16 %v535
        %v634 = vunpack.c.h.b16 %v535
        %v635 = vunpack.c.l.b16 %v536
        %v636 = vunpack.c.h.b16 %v536
        %v637 = vunpack.c.l.b16 %v537
        %v638 = vunpack.c.h.b16 %v537
        %v639 = vunpack.c.l.b16 %v538
        %v640 = vunpack.c.h.b16 %v538
        %v641 = vunpack.c.l.b16 %v539
        %v642 = vunpack.c.h.b16 %v539
        %v643 = vunpack.c.l.b16 %v540
        %v644 = vunpack.c.h.b16 %v540
        %v645 = vunpack.c.l.b16 %v541
        %v646 = vunpack.c.h.b16 %v541
        %v647 = vunpack.c.l.b16 %v542
        %v648 = vunpack.c.h.b16 %v542
        %v649 = vunpack.c.l.b16 %v543
        %v650 = vunpack.c.h.b16 %v543
        %v651 = vunpack.c.l.b16 %v544
        %v652 = vunpack.c.h.b16 %v544
        %v653 = vpack.c.b16 %v591, %v589
        %v654 = vpack.c.b16 %v592, %v590
        %v655 = vpack.c.b16 %v595, %v593
        %v656 = vpack.c.b16 %v596, %v594
        %v657 = vpack.c.b16 %v599, %v597
        %v658 = vpack.c.b16 %v600, %v598
        %v659 = vpack.c.b16 %v603, %v601
        %v660 = vpack.c.b16 %v604, %v602
        %v661 = vpack.c.b16 %v607, %v605
        %v662 = vpack.c.b16 %v608, %v606
        %v663 = vpack.c.b16 %v611, %v609
        %v664 = vpack.c.b16 %v612, %v610
        %v665 = vpack.c.b16 %v615, %v613
        %v666 = vpack.c.b16 %v616, %v614
        %v667 = vpack.c.b16 %v619, %v617
        %v668 = vpack.c.b16 %v620, %v618
        %v669 = vpack.c.b16 %v623, %v621
        %v670 = vpack.c.b16 %v624, %v622
        %v671 = vpack.c.b16 %v627, %v625
        %v672 = vpack.c.b16 %v628, %v626
        %v673 = vpack.c.b16 %v631, %v629
        %v674 = vpack.c.b16 %v632, %v630
        %v675 = vpack.c.b16 %v635, %v633
        %v676 = vpack.c.b16 %v636, %v634
        %v677 = vpack.c.b16 %v639, %v637
        %v678 = vpack.c.b16 %v640, %v638
        %v679 = vpack.c.b16 %v643, %v641
        %v680 = vpack.c.b16 %v644, %v642
        %v681 = vpack.c.b16 %v647, %v645
        %v682 = vpack.c.b16 %v648, %v646
        %v683 = vpack.c.b16 %v651, %v649
        %v684 = vpack.c.b16 %v652, %v650
        %717 = vmatprep.subr.bf16.mxu0 %v654
        %718 = vmatpush1.bf16.msra.mxu0 %v653
        %719 = vmatprep.subr.bf16.mxu0 %v656
        %720 = vmatpush1.bf16.msra.mxu0 %v655
        %721 = vmatprep.subr.bf16.mxu0 %v658
        %722 = vmatpush1.bf16.msra.mxu0 %v657
        %723 = vmatprep.subr.bf16.mxu0 %v660
        %724 = vmatpush1.bf16.msra.mxu0 %v659
        %725 = vmatprep.subr.bf16.mxu0 %v662
        %726 = vmatpush1.bf16.msra.mxu0 %v661
        %727 = vmatprep.subr.bf16.mxu0 %v664
        %728 = vmatpush1.bf16.msra.mxu0 %v663
        %729 = vmatprep.subr.bf16.mxu0 %v666
        %730 = vmatpush1.bf16.msra.mxu0 %v665
        %731 = vmatprep.subr.bf16.mxu0 %v668
        %732 = vmatpush1.bf16.msra.mxu0 %v667
        %733 = vmatprep.subr.bf16.mxu0 %v670
        %734 = vmatpush1.bf16.msra.mxu0 %v669
        %735 = vmatprep.subr.bf16.mxu0 %v672
        %736 = vmatpush1.bf16.msra.mxu0 %v671
        %737 = vmatprep.subr.bf16.mxu0 %v674
        %738 = vmatpush1.bf16.msra.mxu0 %v673
        %739 = vmatprep.subr.bf16.mxu0 %v676
        %740 = vmatpush1.bf16.msra.mxu0 %v675
        %741 = vmatprep.subr.bf16.mxu0 %v678
        %742 = vmatpush1.bf16.msra.mxu0 %v677
        %743 = vmatprep.subr.bf16.mxu0 %v680
        %744 = vmatpush1.bf16.msra.mxu0 %v679
        %745 = vmatprep.subr.bf16.mxu0 %v682
        %746 = vmatpush1.bf16.msra.mxu0 %v681
        %747 = vmatprep.subr.bf16.mxu0 %v684
        %748 = vmatpush1.bf16.msra.mxu0 %v683
        %749 = vmatprep.mubr.bf16.mxu0 %v498
        %750 = vmatmul.mubr.bf16.gmra.mrb[0].mxu0 %v497
        %v751 = vpop.f32.mrb[0].mxu0
        %v752 = vadd.f32 %v550, %v751
        %v753 = vpop.f32.mrb[0].mxu0
        %v754 = vadd.f32 %v554, %v753
        %v755 = vpop.f32.mrb[0].mxu0
        %v756 = vadd.f32 %v550, %v755
        %v757 = vpop.f32.mrb[0].mxu0
        %v758 = vadd.f32 %v554, %v757
        %759 = vmatprep.mubr.bf16.mxu0 %v500
        %760 = vmatmul.mubr.bf16.gmra.mrb[0].mxu0 %v499
        %v761 = vpop.f32.mrb[0].mxu0
        %v762 = vadd.f32 %v550, %v761
        %v763 = vpop.f32.mrb[0].mxu0
        %v764 = vadd.f32 %v554, %v763
        %v765 = vpop.f32.mrb[0].mxu0
        %v766 = vadd.f32 %v550, %v765
        %v767 = vpop.f32.mrb[0].mxu0
        %v768 = vadd.f32 %v554, %v767
        %769 = vmatprep.mubr.bf16.mxu0 %v502
        %770 = vmatmul.mubr.bf16.gmra.mrb[0].mxu0 %v501
        %v771 = vpop.f32.mrb[0].mxu0
        %v772 = vadd.f32 %v550, %v771
        %v773 = vpop.f32.mrb[0].mxu0
        %v774 = vadd.f32 %v554, %v773
        %v775 = vpop.f32.mrb[0].mxu0
        %v776 = vadd.f32 %v550, %v775
        %v777 = vpop.f32.mrb[0].mxu0
        %v778 = vadd.f32 %v554, %v777
        %779 = vmatprep.mubr.bf16.mxu0 %v504
        %780 = vmatmul.mubr.bf16.gmra.mrb[0].mxu0 %v503
        %v781 = vpop.f32.mrb[0].mxu0
        %v782 = vadd.f32 %v550, %v781
        %v783 = vpop.f32.mrb[0].mxu0
        %v784 = vadd.f32 %v554, %v783
        %v785 = vpop.f32.mrb[0].mxu0
        %v786 = vadd.f32 %v550, %v785
        %v787 = vpop.f32.mrb[0].mxu0
        %v788 = vadd.f32 %v554, %v787
        %789 = vmatprep.mubr.bf16.mxu0 %v506
        %790 = vmatmul.mubr.bf16.gmra.mrb[0].mxu0 %v505
        %v791 = vpop.f32.mrb[0].mxu0
        %v792 = vadd.f32 %v550, %v791
        %v793 = vpop.f32.mrb[0].mxu0
        %v794 = vadd.f32 %v554, %v793
        %v795 = vpop.f32.mrb[0].mxu0
        %v796 = vadd.f32 %v550, %v795
        %v797 = vpop.f32.mrb[0].mxu0
        %v798 = vadd.f32 %v554, %v797
        %799 = vmatprep.mubr.bf16.mxu0 %v508
        %800 = vmatmul.mubr.bf16.gmra.mrb[0].mxu0 %v507
        %v801 = vpop.f32.mrb[0].mxu0
        %v802 = vadd.f32 %v550, %v801
        %v803 = vpop.f32.mrb[0].mxu0
        %v804 = vadd.f32 %v554, %v803
        %v805 = vpop.f32.mrb[0].mxu0
        %v806 = vadd.f32 %v550, %v805
        %v807 = vpop.f32.mrb[0].mxu0
        %v808 = vadd.f32 %v554, %v807
        %809 = vmatprep.mubr.bf16.mxu0 %v510
        %810 = vmatmul.mubr.bf16.gmra.mrb[0].mxu0 %v509
        %v811 = vpop.f32.mrb[0].mxu0
        %v812 = vadd.f32 %v550, %v811
        %v813 = vpop.f32.mrb[0].mxu0
        %v814 = vadd.f32 %v554, %v813
        %v815 = vpop.f32.mrb[0].mxu0
        %v816 = vadd.f32 %v550, %v815
        %v817 = vpop.f32.mrb[0].mxu0
        %v818 = vadd.f32 %v554, %v817
        %819 = vmatprep.mubr.bf16.mxu0 %v512
        %820 = vmatmul.mubr.bf16.gmra.mrb[0].mxu0 %v511
        %v821 = vpop.f32.mrb[0].mxu0
        %v822 = vadd.f32 %v550, %v821
        %v823 = vpop.f32.mrb[0].mxu0
        %v824 = vadd.f32 %v554, %v823
        %v825 = vpop.f32.mrb[0].mxu0
        %v826 = vadd.f32 %v550, %v825
        %v827 = vpop.f32.mrb[0].mxu0
        %v828 = vadd.f32 %v554, %v827
        %829 = vdwg.mxu0
        %v830 = vmax.f32 %v752, 0.0
        %v831 = vmax.f32 %v754, 0.0
        %v832 = vmax.f32 %v756, 0.0
        %v833 = vmax.f32 %v758, 0.0
        %v834 = vmax.f32 %v762, 0.0
        %v835 = vmax.f32 %v764, 0.0
        %v836 = vmax.f32 %v766, 0.0
        %v837 = vmax.f32 %v768, 0.0
        %v838 = vmax.f32 %v772, 0.0
        %v839 = vmax.f32 %v774, 0.0
        %v840 = vmax.f32 %v776, 0.0
        %v841 = vmax.f32 %v778, 0.0
        %v842 = vmax.f32 %v782, 0.0
        %v843 = vmax.f32 %v784, 0.0
        %v844 = vmax.f32 %v786, 0.0
        %v845 = vmax.f32 %v788, 0.0
        %v846 = vmax.f32 %v792, 0.0
        %v847 = vmax.f32 %v794, 0.0
        %v848 = vmax.f32 %v796, 0.0
        %v849 = vmax.f32 %v798, 0.0
        %v850 = vmax.f32 %v802, 0.0
        %v851 = vmax.f32 %v804, 0.0
        %v852 = vmax.f32 %v806, 0.0
        %v853 = vmax.f32 %v808, 0.0
        %v854 = vmax.f32 %v812, 0.0
        %v855 = vmax.f32 %v814, 0.0
        %v856 = vmax.f32 %v816, 0.0
        %v857 = vmax.f32 %v818, 0.0
        %v858 = vmax.f32 %v822, 0.0
        %v859 = vmax.f32 %v824, 0.0
        %v860 = vmax.f32 %v826, 0.0
        %v861 = vmax.f32 %v828, 0.0
        %v862 = vpack.c.bf16 %v832, %v830
        %v863 = vpack.c.bf16 %v833, %v831
        %v864 = vpack.c.bf16 %v836, %v834
        %v865 = vpack.c.bf16 %v837, %v835
        %v866 = vpack.c.bf16 %v840, %v838
        %v867 = vpack.c.bf16 %v841, %v839
        %v868 = vpack.c.bf16 %v844, %v842
        %v869 = vpack.c.bf16 %v845, %v843
        %v870 = vpack.c.bf16 %v848, %v846
        %v871 = vpack.c.bf16 %v849, %v847
        %v872 = vpack.c.bf16 %v852, %v850
        %v873 = vpack.c.bf16 %v853, %v851
        %v874 = vpack.c.bf16 %v856, %v854
        %v875 = vpack.c.bf16 %v857, %v855
        %v876 = vpack.c.bf16 %v860, %v858
        %v877 = vpack.c.bf16 %v861, %v859
        %v878 = vld [vmem:[#allocation7] sm:$0xff]
        %v879 = vld [vmem:[#allocation7 + $0x8] sm:$0xff]
        %v880 = vld [vmem:[#allocation7 + $0x10] sm:$0xff]
        %v881 = vld [vmem:[#allocation7 + $0x18] sm:$0xff]
        %v882 = vld [vmem:[#allocation7 + $0x20] sm:$0xff]
        %v883 = vld [vmem:[#allocation7 + $0x28] sm:$0xff]
        %v884 = vld [vmem:[#allocation7 + $0x30] sm:$0xff]
        %v885 = vld [vmem:[#allocation7 + $0x38] sm:$0xff]
        %v886 = vld [vmem:[#allocation7 + $0x40] sm:$0xff]
        %v887 = vld [vmem:[#allocation7 + $0x48] sm:$0xff]
        %v888 = vld [vmem:[#allocation7 + $0x50] sm:$0xff]
        %v889 = vld [vmem:[#allocation7 + $0x58] sm:$0xff]
        %v890 = vld [vmem:[#allocation7 + $0x60] sm:$0xff]
        %v891 = vld [vmem:[#allocation7 + $0x68] sm:$0xff]
        %v892 = vld [vmem:[#allocation7 + $0x70] sm:$0xff]
        %v893 = vld [vmem:[#allocation7 + $0x78] sm:$0xff]
        %v894 = vld [vmem:[#allocation7 + $0x80] sm:$0xff]
        %v895 = vld [vmem:[#allocation7 + $0x88] sm:$0xff]
        %v896 = vld [vmem:[#allocation7 + $0x90] sm:$0xff]
        %v897 = vld [vmem:[#allocation7 + $0x98] sm:$0xff]
        %v898 = vld [vmem:[#allocation7 + $0xa0] sm:$0xff]
        %v899 = vld [vmem:[#allocation7 + $0xa8] sm:$0xff]
        %v900 = vld [vmem:[#allocation7 + $0xb0] sm:$0xff]
        %v901 = vld [vmem:[#allocation7 + $0xb8] sm:$0xff]
        %v902 = vld [vmem:[#allocation7 + $0xc0] sm:$0xff]
        %v903 = vld [vmem:[#allocation7 + $0xc8] sm:$0xff]
        %v904 = vld [vmem:[#allocation7 + $0xd0] sm:$0xff]
        %v905 = vld [vmem:[#allocation7 + $0xd8] sm:$0xff]
        %v906 = vld [vmem:[#allocation7 + $0xe0] sm:$0xff]
        %v907 = vld [vmem:[#allocation7 + $0xe8] sm:$0xff]
        %v908 = vld [vmem:[#allocation7 + $0xf0] sm:$0xff]
        %v909 = vld [vmem:[#allocation7 + $0xf8] sm:$0xff]
        %v910 = vld [vmem:[%s5] sm:$0x3]
        %v912 = vlaneseq
        %v913 = vshrl.u32 %v912, 7
        %v914 = vsub.s32 0, %v913
        %v915 = vrot.slane %v910, %v914
        %v916 = vlaneseq
        %v917 = vshrl.u32 %v916, 7
        %v918 = vsub.s32 1, %v917
        %v919 = vrot.slane %v910, %v918
        %v954 = vunpack.c.l.b16 %v878
        %v955 = vunpack.c.h.b16 %v878
        %v956 = vunpack.c.l.b16 %v879
        %v957 = vunpack.c.h.b16 %v879
        %v958 = vunpack.c.l.b16 %v880
        %v959 = vunpack.c.h.b16 %v880
        %v960 = vunpack.c.l.b16 %v881
        %v961 = vunpack.c.h.b16 %v881
        %v962 = vunpack.c.l.b16 %v882
        %v963 = vunpack.c.h.b16 %v882
        %v964 = vunpack.c.l.b16 %v883
        %v965 = vunpack.c.h.b16 %v883
        %v966 = vunpack.c.l.b16 %v884
        %v967 = vunpack.c.h.b16 %v884
        %v968 = vunpack.c.l.b16 %v885
        %v969 = vunpack.c.h.b16 %v885
        %v970 = vunpack.c.l.b16 %v886
        %v971 = vunpack.c.h.b16 %v886
        %v972 = vunpack.c.l.b16 %v887
        %v973 = vunpack.c.h.b16 %v887
        %v974 = vunpack.c.l.b16 %v888
        %v975 = vunpack.c.h.b16 %v888
        %v976 = vunpack.c.l.b16 %v889
        %v977 = vunpack.c.h.b16 %v889
        %v978 = vunpack.c.l.b16 %v890
        %v979 = vunpack.c.h.b16 %v890
        %v980 = vunpack.c.l.b16 %v891
        %v981 = vunpack.c.h.b16 %v891
        %v982 = vunpack.c.l.b16 %v892
        %v983 = vunpack.c.h.b16 %v892
        %v984 = vunpack.c.l.b16 %v893
        %v985 = vunpack.c.h.b16 %v893
        %v986 = vunpack.c.l.b16 %v894
        %v987 = vunpack.c.h.b16 %v894
        %v988 = vunpack.c.l.b16 %v895
        %v989 = vunpack.c.h.b16 %v895
        %v990 = vunpack.c.l.b16 %v896
        %v991 = vunpack.c.h.b16 %v896
        %v992 = vunpack.c.l.b16 %v897
        %v993 = vunpack.c.h.b16 %v897
        %v994 = vunpack.c.l.b16 %v898
        %v995 = vunpack.c.h.b16 %v898
        %v996 = vunpack.c.l.b16 %v899
        %v997 = vunpack.c.h.b16 %v899
        %v998 = vunpack.c.l.b16 %v900
        %v999 = vunpack.c.h.b16 %v900
        %v1000 = vunpack.c.l.b16 %v901
        %v1001 = vunpack.c.h.b16 %v901
        %v1002 = vunpack.c.l.b16 %v902
        %v1003 = vunpack.c.h.b16 %v902
        %v1004 = vunpack.c.l.b16 %v903
        %v1005 = vunpack.c.h.b16 %v903
        %v1006 = vunpack.c.l.b16 %v904
        %v1007 = vunpack.c.h.b16 %v904
        %v1008 = vunpack.c.l.b16 %v905
        %v1009 = vunpack.c.h.b16 %v905
        %v1010 = vunpack.c.l.b16 %v906
        %v1011 = vunpack.c.h.b16 %v906
        %v1012 = vunpack.c.l.b16 %v907
        %v1013 = vunpack.c.h.b16 %v907
        %v1014 = vunpack.c.l.b16 %v908
        %v1015 = vunpack.c.h.b16 %v908
        %v1016 = vunpack.c.l.b16 %v909
        %v1017 = vunpack.c.h.b16 %v909
        %v1018 = vpack.c.b16 %v956, %v954
        %v1019 = vpack.c.b16 %v957, %v955
        %v1020 = vpack.c.b16 %v960, %v958
        %v1021 = vpack.c.b16 %v961, %v959
        %v1022 = vpack.c.b16 %v964, %v962
        %v1023 = vpack.c.b16 %v965, %v963
        %v1024 = vpack.c.b16 %v968, %v966
        %v1025 = vpack.c.b16 %v969, %v967
        %v1026 = vpack.c.b16 %v972, %v970
        %v1027 = vpack.c.b16 %v973, %v971
        %v1028 = vpack.c.b16 %v976, %v974
        %v1029 = vpack.c.b16 %v977, %v975
        %v1030 = vpack.c.b16 %v980, %v978
        %v1031 = vpack.c.b16 %v981, %v979
        %v1032 = vpack.c.b16 %v984, %v982
        %v1033 = vpack.c.b16 %v985, %v983
        %v1034 = vpack.c.b16 %v988, %v986
        %v1035 = vpack.c.b16 %v989, %v987
        %v1036 = vpack.c.b16 %v992, %v990
        %v1037 = vpack.c.b16 %v993, %v991
        %v1038 = vpack.c.b16 %v996, %v994
        %v1039 = vpack.c.b16 %v997, %v995
        %v1040 = vpack.c.b16 %v1000, %v998
        %v1041 = vpack.c.b16 %v1001, %v999
        %v1042 = vpack.c.b16 %v1004, %v1002
        %v1043 = vpack.c.b16 %v1005, %v1003
        %v1044 = vpack.c.b16 %v1008, %v1006
        %v1045 = vpack.c.b16 %v1009, %v1007
        %v1046 = vpack.c.b16 %v1012, %v1010
        %v1047 = vpack.c.b16 %v1013, %v1011
        %v1048 = vpack.c.b16 %v1016, %v1014
        %v1049 = vpack.c.b16 %v1017, %v1015
        %1082 = vmatprep.subr.bf16.mxu0 %v1019
        %1083 = vmatpush1.bf16.msra.mxu0 %v1018
        %1084 = vmatprep.subr.bf16.mxu0 %v1021
        %1085 = vmatpush1.bf16.msra.mxu0 %v1020
        %1086 = vmatprep.subr.bf16.mxu0 %v1023
        %1087 = vmatpush1.bf16.msra.mxu0 %v1022
        %1088 = vmatprep.subr.bf16.mxu0 %v1025
        %1089 = vmatpush1.bf16.msra.mxu0 %v1024
        %1090 = vmatprep.subr.bf16.mxu0 %v1027
        %1091 = vmatpush1.bf16.msra.mxu0 %v1026
        %1092 = vmatprep.subr.bf16.mxu0 %v1029
        %1093 = vmatpush1.bf16.msra.mxu0 %v1028
        %1094 = vmatprep.subr.bf16.mxu0 %v1031
        %1095 = vmatpush1.bf16.msra.mxu0 %v1030
        %1096 = vmatprep.subr.bf16.mxu0 %v1033
        %1097 = vmatpush1.bf16.msra.mxu0 %v1032
        %1098 = vmatprep.subr.bf16.mxu0 %v1035
        %1099 = vmatpush1.bf16.msra.mxu0 %v1034
        %1100 = vmatprep.subr.bf16.mxu0 %v1037
        %1101 = vmatpush1.bf16.msra.mxu0 %v1036
        %1102 = vmatprep.subr.bf16.mxu0 %v1039
        %1103 = vmatpush1.bf16.msra.mxu0 %v1038
        %1104 = vmatprep.subr.bf16.mxu0 %v1041
        %1105 = vmatpush1.bf16.msra.mxu0 %v1040
        %1106 = vmatprep.subr.bf16.mxu0 %v1043
        %1107 = vmatpush1.bf16.msra.mxu0 %v1042
        %1108 = vmatprep.subr.bf16.mxu0 %v1045
        %1109 = vmatpush1.bf16.msra.mxu0 %v1044
        %1110 = vmatprep.subr.bf16.mxu0 %v1047
        %1111 = vmatpush1.bf16.msra.mxu0 %v1046
        %1112 = vmatprep.subr.bf16.mxu0 %v1049
        %1113 = vmatpush1.bf16.msra.mxu0 %v1048
        %1114 = vmatprep.mubr.bf16.mxu0 %v863
        %1115 = vmatmul.mubr.bf16.gmra.mrb[0].mxu0 %v862
        %v1116 = vpop.f32.mrb[0].mxu0
        %v1117 = vadd.f32 %v915, %v1116
        %v1118 = vpop.f32.mrb[0].mxu0
        %v1119 = vadd.f32 %v919, %v1118
        %v1120 = vpop.f32.mrb[0].mxu0
        %v1121 = vadd.f32 %v915, %v1120
        %v1122 = vpop.f32.mrb[0].mxu0
        %v1123 = vadd.f32 %v919, %v1122
        %1124 = vmatprep.mubr.bf16.mxu0 %v865
        %1125 = vmatmul.mubr.bf16.gmra.mrb[0].mxu0 %v864
        %v1126 = vpop.f32.mrb[0].mxu0
        %v1127 = vadd.f32 %v915, %v1126
        %v1128 = vpop.f32.mrb[0].mxu0
        %v1129 = vadd.f32 %v919, %v1128
        %v1130 = vpop.f32.mrb[0].mxu0
        %v1131 = vadd.f32 %v915, %v1130
        %v1132 = vpop.f32.mrb[0].mxu0
        %v1133 = vadd.f32 %v919, %v1132
        %1134 = vmatprep.mubr.bf16.mxu0 %v867
        %1135 = vmatmul.mubr.bf16.gmra.mrb[0].mxu0 %v866
        %v1136 = vpop.f32.mrb[0].mxu0
        %v1137 = vadd.f32 %v915, %v1136
        %v1138 = vpop.f32.mrb[0].mxu0
        %v1139 = vadd.f32 %v919, %v1138
        %v1140 = vpop.f32.mrb[0].mxu0
        %v1141 = vadd.f32 %v915, %v1140
        %v1142 = vpop.f32.mrb[0].mxu0
        %v1143 = vadd.f32 %v919, %v1142
        %1144 = vmatprep.mubr.bf16.mxu0 %v869
        %1145 = vmatmul.mubr.bf16.gmra.mrb[0].mxu0 %v868
        %v1146 = vpop.f32.mrb[0].mxu0
        %v1147 = vadd.f32 %v915, %v1146
        %v1148 = vpop.f32.mrb[0].mxu0
        %v1149 = vadd.f32 %v919, %v1148
        %v1150 = vpop.f32.mrb[0].mxu0
        %v1151 = vadd.f32 %v915, %v1150
        %v1152 = vpop.f32.mrb[0].mxu0
        %v1153 = vadd.f32 %v919, %v1152
        %1154 = vmatprep.mubr.bf16.mxu0 %v871
        %1155 = vmatmul.mubr.bf16.gmra.mrb[0].mxu0 %v870
        %v1156 = vpop.f32.mrb[0].mxu0
        %v1157 = vadd.f32 %v915, %v1156
        %v1158 = vpop.f32.mrb[0].mxu0
        %v1159 = vadd.f32 %v919, %v1158
        %v1160 = vpop.f32.mrb[0].mxu0
        %v1161 = vadd.f32 %v915, %v1160
        %v1162 = vpop.f32.mrb[0].mxu0
        %v1163 = vadd.f32 %v919, %v1162
        %1164 = vmatprep.mubr.bf16.mxu0 %v873
        %1165 = vmatmul.mubr.bf16.gmra.mrb[0].mxu0 %v872
        %v1166 = vpop.f32.mrb[0].mxu0
        %v1167 = vadd.f32 %v915, %v1166
        %v1168 = vpop.f32.mrb[0].mxu0
        %v1169 = vadd.f32 %v919, %v1168
        %v1170 = vpop.f32.mrb[0].mxu0
        %v1171 = vadd.f32 %v915, %v1170
        %v1172 = vpop.f32.mrb[0].mxu0
        %v1173 = vadd.f32 %v919, %v1172
        %1174 = vmatprep.mubr.bf16.mxu0 %v875
        %1175 = vmatmul.mubr.bf16.gmra.mrb[0].mxu0 %v874
        %v1176 = vpop.f32.mrb[0].mxu0
        %v1177 = vadd.f32 %v915, %v1176
        %v1178 = vpop.f32.mrb[0].mxu0
        %v1179 = vadd.f32 %v919, %v1178
        %v1180 = vpop.f32.mrb[0].mxu0
        %v1181 = vadd.f32 %v915, %v1180
        %v1182 = vpop.f32.mrb[0].mxu0
        %v1183 = vadd.f32 %v919, %v1182
        %1184 = vmatprep.mubr.bf16.mxu0 %v877
        %1185 = vmatmul.mubr.bf16.gmra.mrb[0].mxu0 %v876
        %v1186 = vpop.f32.mrb[0].mxu0
        %v1187 = vadd.f32 %v915, %v1186
        %v1188 = vpop.f32.mrb[0].mxu0
        %v1189 = vadd.f32 %v919, %v1188
        %v1190 = vpop.f32.mrb[0].mxu0
        %v1191 = vadd.f32 %v915, %v1190
        %v1192 = vpop.f32.mrb[0].mxu0
        %v1193 = vadd.f32 %v919, %v1192
        %1194 = vdwg.mxu0
        %v1195 = vmax.f32 %v1117, 0.0
        %v1196 = vmax.f32 %v1119, 0.0
        %v1197 = vmax.f32 %v1121, 0.0
        %v1198 = vmax.f32 %v1123, 0.0
        %v1199 = vmax.f32 %v1127, 0.0
        %v1200 = vmax.f32 %v1129, 0.0
        %v1201 = vmax.f32 %v1131, 0.0
        %v1202 = vmax.f32 %v1133, 0.0
        %v1203 = vmax.f32 %v1137, 0.0
        %v1204 = vmax.f32 %v1139, 0.0
        %v1205 = vmax.f32 %v1141, 0.0
        %v1206 = vmax.f32 %v1143, 0.0
        %v1207 = vmax.f32 %v1147, 0.0
        %v1208 = vmax.f32 %v1149, 0.0
        %v1209 = vmax.f32 %v1151, 0.0
        %v1210 = vmax.f32 %v1153, 0.0
        %v1211 = vmax.f32 %v1157, 0.0
        %v1212 = vmax.f32 %v1159, 0.0
        %v1213 = vmax.f32 %v1161, 0.0
        %v1214 = vmax.f32 %v1163, 0.0
        %v1215 = vmax.f32 %v1167, 0.0
        %v1216 = vmax.f32 %v1169, 0.0
        %v1217 = vmax.f32 %v1171, 0.0
        %v1218 = vmax.f32 %v1173, 0.0
        %v1219 = vmax.f32 %v1177, 0.0
        %v1220 = vmax.f32 %v1179, 0.0
        %v1221 = vmax.f32 %v1181, 0.0
        %v1222 = vmax.f32 %v1183, 0.0
        %v1223 = vmax.f32 %v1187, 0.0
        %v1224 = vmax.f32 %v1189, 0.0
        %v1225 = vmax.f32 %v1191, 0.0
        %v1226 = vmax.f32 %v1193, 0.0
        %v1227 = vpack.c.bf16 %v1197, %v1195
        %v1228 = vpack.c.bf16 %v1198, %v1196
        %v1229 = vpack.c.bf16 %v1201, %v1199
        %v1230 = vpack.c.bf16 %v1202, %v1200
        %v1231 = vpack.c.bf16 %v1205, %v1203
        %v1232 = vpack.c.bf16 %v1206, %v1204
        %v1233 = vpack.c.bf16 %v1209, %v1207
        %v1234 = vpack.c.bf16 %v1210, %v1208
        %v1235 = vpack.c.bf16 %v1213, %v1211
        %v1236 = vpack.c.bf16 %v1214, %v1212
        %v1237 = vpack.c.bf16 %v1217, %v1215
        %v1238 = vpack.c.bf16 %v1218, %v1216
        %v1239 = vpack.c.bf16 %v1221, %v1219
        %v1240 = vpack.c.bf16 %v1222, %v1220
        %v1241 = vpack.c.bf16 %v1225, %v1223
        %v1242 = vpack.c.bf16 %v1226, %v1224
        %v1243 = vld [vmem:[%s6] sm:$0xf]
        %v1244 = vld [vmem:[%s6 + $0x4] sm:$0xf]
        %v1245 = vld [vmem:[%s6 + $0x8] sm:$0xf]
        %v1246 = vld [vmem:[%s6 + $0xc] sm:$0xf]
        %v1247 = vld [vmem:[%s6 + $0x10] sm:$0xf]
        %v1248 = vld [vmem:[%s6 + $0x14] sm:$0xf]
        %v1249 = vld [vmem:[%s6 + $0x18] sm:$0xf]
        %v1250 = vld [vmem:[%s6 + $0x1c] sm:$0xf]
        %v1251 = vld [vmem:[%s6 + $0x20] sm:$0xf]
        %v1252 = vld [vmem:[%s6 + $0x24] sm:$0xf]
        %v1253 = vld [vmem:[%s6 + $0x28] sm:$0xf]
        %v1254 = vld [vmem:[%s6 + $0x2c] sm:$0xf]
        %v1255 = vld [vmem:[%s6 + $0x30] sm:$0xf]
        %v1256 = vld [vmem:[%s6 + $0x34] sm:$0xf]
        %v1257 = vld [vmem:[%s6 + $0x38] sm:$0xf]
        %v1258 = vld [vmem:[%s6 + $0x3c] sm:$0xf]
        %v1259 = vld [vmem:[%s6 + $0x40] sm:$0xf]
        %v1260 = vld [vmem:[%s6 + $0x44] sm:$0xf]
        %v1261 = vld [vmem:[%s6 + $0x48] sm:$0xf]
        %v1262 = vld [vmem:[%s6 + $0x4c] sm:$0xf]
        %v1263 = vld [vmem:[%s6 + $0x50] sm:$0xf]
        %v1264 = vld [vmem:[%s6 + $0x54] sm:$0xf]
        %v1265 = vld [vmem:[%s6 + $0x58] sm:$0xf]
        %v1266 = vld [vmem:[%s6 + $0x5c] sm:$0xf]
        %v1267 = vld [vmem:[%s6 + $0x60] sm:$0xf]
        %v1268 = vld [vmem:[%s6 + $0x64] sm:$0xf]
        %v1269 = vld [vmem:[%s6 + $0x68] sm:$0xf]
        %v1270 = vld [vmem:[%s6 + $0x6c] sm:$0xf]
        %v1271 = vld [vmem:[%s6 + $0x70] sm:$0xf]
        %v1272 = vld [vmem:[%s6 + $0x74] sm:$0xf]
        %v1273 = vld [vmem:[%s6 + $0x78] sm:$0xf]
        %v1274 = vld [vmem:[%s6 + $0x7c] sm:$0xf]
        %v1275 = vld [vmem:[%s7] sm:$0x1]
        %v1277 = vlaneseq
        %v1278 = vshrl.u32 %v1277, 7
        %v1279 = vsub.s32 0, %v1278
        %v1280 = vrot.slane %v1275, %v1279
        %v1314 = vunpack.c.l.b16 %v1243
        %v1315 = vunpack.c.l.b16 %v1244
        %v1316 = vunpack.c.l.b16 %v1245
        %v1317 = vunpack.c.l.b16 %v1246
        %v1318 = vunpack.c.l.b16 %v1247
        %v1319 = vunpack.c.l.b16 %v1248
        %v1320 = vunpack.c.l.b16 %v1249
        %v1321 = vunpack.c.l.b16 %v1250
        %v1322 = vunpack.c.l.b16 %v1251
        %v1323 = vunpack.c.l.b16 %v1252
        %v1324 = vunpack.c.l.b16 %v1253
        %v1325 = vunpack.c.l.b16 %v1254
        %v1326 = vunpack.c.l.b16 %v1255
        %v1327 = vunpack.c.l.b16 %v1256
        %v1328 = vunpack.c.l.b16 %v1257
        %v1329 = vunpack.c.l.b16 %v1258
        %v1330 = vunpack.c.l.b16 %v1259
        %v1331 = vunpack.c.l.b16 %v1260
        %v1332 = vunpack.c.l.b16 %v1261
        %v1333 = vunpack.c.l.b16 %v1262
        %v1334 = vunpack.c.l.b16 %v1263
        %v1335 = vunpack.c.l.b16 %v1264
        %v1336 = vunpack.c.l.b16 %v1265
        %v1337 = vunpack.c.l.b16 %v1266
        %v1338 = vunpack.c.l.b16 %v1267
        %v1339 = vunpack.c.l.b16 %v1268
        %v1340 = vunpack.c.l.b16 %v1269
        %v1341 = vunpack.c.l.b16 %v1270
        %v1342 = vunpack.c.l.b16 %v1271
        %v1343 = vunpack.c.l.b16 %v1272
        %v1344 = vunpack.c.l.b16 %v1273
        %v1345 = vunpack.c.l.b16 %v1274
        %v1346 = vpack.c.b16 %v1315, %v1314
        %v1347 = vpack.c.b16 %v1317, %v1316
        %v1348 = vpack.c.b16 %v1319, %v1318
        %v1349 = vpack.c.b16 %v1321, %v1320
        %v1350 = vpack.c.b16 %v1323, %v1322
        %v1351 = vpack.c.b16 %v1325, %v1324
        %v1352 = vpack.c.b16 %v1327, %v1326
        %v1353 = vpack.c.b16 %v1329, %v1328
        %v1354 = vpack.c.b16 %v1331, %v1330
        %v1355 = vpack.c.b16 %v1333, %v1332
        %v1356 = vpack.c.b16 %v1335, %v1334
        %v1357 = vpack.c.b16 %v1337, %v1336
        %v1358 = vpack.c.b16 %v1339, %v1338
        %v1359 = vpack.c.b16 %v1341, %v1340
        %v1360 = vpack.c.b16 %v1343, %v1342
        %v1361 = vpack.c.b16 %v1345, %v1344
        %1378 = vmatprep.subr.bf16.mxu0 0
        %1379 = vmatpush1.bf16.msra.mxu0 %v1346
        %1380 = vmatprep.subr.bf16.mxu0 0
        %1381 = vmatpush1.bf16.msra.mxu0 %v1347
        %1382 = vmatprep.subr.bf16.mxu0 0
        %1383 = vmatpush1.bf16.msra.mxu0 %v1348
        %1384 = vmatprep.subr.bf16.mxu0 0
        %1385 = vmatpush1.bf16.msra.mxu0 %v1349
        %1386 = vmatprep.subr.bf16.mxu0 0
        %1387 = vmatpush1.bf16.msra.mxu0 %v1350
        %1388 = vmatprep.subr.bf16.mxu0 0
        %1389 = vmatpush1.bf16.msra.mxu0 %v1351
        %1390 = vmatprep.subr.bf16.mxu0 0
        %1391 = vmatpush1.bf16.msra.mxu0 %v1352
        %1392 = vmatprep.subr.bf16.mxu0 0
        %1393 = vmatpush1.bf16.msra.mxu0 %v1353
        %1394 = vmatprep.subr.bf16.mxu0 0
        %1395 = vmatpush1.bf16.msra.mxu0 %v1354
        %1396 = vmatprep.subr.bf16.mxu0 0
        %1397 = vmatpush1.bf16.msra.mxu0 %v1355
        %1398 = vmatprep.subr.bf16.mxu0 0
        %1399 = vmatpush1.bf16.msra.mxu0 %v1356
        %1400 = vmatprep.subr.bf16.mxu0 0
        %1401 = vmatpush1.bf16.msra.mxu0 %v1357
        %1402 = vmatprep.subr.bf16.mxu0 0
        %1403 = vmatpush1.bf16.msra.mxu0 %v1358
        %1404 = vmatprep.subr.bf16.mxu0 0
        %1405 = vmatpush1.bf16.msra.mxu0 %v1359
        %1406 = vmatprep.subr.bf16.mxu0 0
        %1407 = vmatpush1.bf16.msra.mxu0 %v1360
        %1408 = vmatprep.subr.bf16.mxu0 0
        %1409 = vmatpush1.bf16.msra.mxu0 %v1361
        %1410 = vmatprep.mubr.bf16.mxu0 %v1228
        %1411 = vmatmul.mubr.bf16.gmra.mrb[0].mxu0 %v1227
        %v1412 = vpop.f32.mrb[0].mxu0
        %v1413 = vadd.f32 %v1280, %v1412
        %v1414 = vpop.f32.mrb[0].mxu0
        %v1415 = vpop.f32.mrb[0].mxu0
        %v1416 = vadd.f32 %v1280, %v1415
        %v1417 = vpop.f32.mrb[0].mxu0
        %1418 = vmatprep.mubr.bf16.mxu0 %v1230
        %1419 = vmatmul.mubr.bf16.gmra.mrb[0].mxu0 %v1229
        %v1420 = vpop.f32.mrb[0].mxu0
        %v1421 = vadd.f32 %v1280, %v1420
        %v1422 = vpop.f32.mrb[0].mxu0
        %v1423 = vpop.f32.mrb[0].mxu0
        %v1424 = vadd.f32 %v1280, %v1423
        %v1425 = vpop.f32.mrb[0].mxu0
        %1426 = vmatprep.mubr.bf16.mxu0 %v1232
        %1427 = vmatmul.mubr.bf16.gmra.mrb[0].mxu0 %v1231
        %v1428 = vpop.f32.mrb[0].mxu0
        %v1429 = vadd.f32 %v1280, %v1428
        %v1430 = vpop.f32.mrb[0].mxu0
        %v1431 = vpop.f32.mrb[0].mxu0
        %v1432 = vadd.f32 %v1280, %v1431
        %v1433 = vpop.f32.mrb[0].mxu0
        %1434 = vmatprep.mubr.bf16.mxu0 %v1234
        %1435 = vmatmul.mubr.bf16.gmra.mrb[0].mxu0 %v1233
        %v1436 = vpop.f32.mrb[0].mxu0
        %v1437 = vadd.f32 %v1280, %v1436
        %v1438 = vpop.f32.mrb[0].mxu0
        %v1439 = vpop.f32.mrb[0].mxu0
        %v1440 = vadd.f32 %v1280, %v1439
        %v1441 = vpop.f32.mrb[0].mxu0
        %1442 = vmatprep.mubr.bf16.mxu0 %v1236
        %1443 = vmatmul.mubr.bf16.gmra.mrb[0].mxu0 %v1235
        %v1444 = vpop.f32.mrb[0].mxu0
        %v1445 = vadd.f32 %v1280, %v1444
        %v1446 = vpop.f32.mrb[0].mxu0
        %v1447 = vpop.f32.mrb[0].mxu0
        %v1448 = vadd.f32 %v1280, %v1447
        %v1449 = vpop.f32.mrb[0].mxu0
        %1450 = vmatprep.mubr.bf16.mxu0 %v1238
        %1451 = vmatmul.mubr.bf16.gmra.mrb[0].mxu0 %v1237
        %v1452 = vpop.f32.mrb[0].mxu0
        %v1453 = vadd.f32 %v1280, %v1452
        %v1454 = vpop.f32.mrb[0].mxu0
        %v1455 = vpop.f32.mrb[0].mxu0
        %v1456 = vadd.f32 %v1280, %v1455
        %v1457 = vpop.f32.mrb[0].mxu0
        %1458 = vmatprep.mubr.bf16.mxu0 %v1240
        %1459 = vmatmul.mubr.bf16.gmra.mrb[0].mxu0 %v1239
        %v1460 = vpop.f32.mrb[0].mxu0
        %v1461 = vadd.f32 %v1280, %v1460
        %v1462 = vpop.f32.mrb[0].mxu0
        %v1463 = vpop.f32.mrb[0].mxu0
        %v1464 = vadd.f32 %v1280, %v1463
        %v1465 = vpop.f32.mrb[0].mxu0
        %1466 = vmatprep.mubr.bf16.mxu0 %v1242
        %1467 = vmatmul.mubr.bf16.gmra.mrb[0].mxu0 %v1241
        %v1468 = vpop.f32.mrb[0].mxu0
        %v1469 = vadd.f32 %v1280, %v1468
        %v1470 = vpop.f32.mrb[0].mxu0
        %v1471 = vpop.f32.mrb[0].mxu0
        %v1472 = vadd.f32 %v1280, %v1471
        %v1473 = vpop.f32.mrb[0].mxu0
        %1474 = vdwg.mxu0
        %vm1475 = vcmask 64512
        %1476 = vst.msk [vmem:[%s398] sm:$0xff] %vm1475, %v1413
        %1477 = vst.msk [vmem:[%s398 + $0x8] sm:$0xff] %vm1475, %v1416
        %1478 = vst.msk [vmem:[%s398 + $0x10] sm:$0xff] %vm1475, %v1421
        %1479 = vst.msk [vmem:[%s398 + $0x18] sm:$0xff] %vm1475, %v1424
        %1480 = vst.msk [vmem:[%s398 + $0x20] sm:$0xff] %vm1475, %v1429
        %1481 = vst.msk [vmem:[%s398 + $0x28] sm:$0xff] %vm1475, %v1432
        %1482 = vst.msk [vmem:[%s398 + $0x30] sm:$0xff] %vm1475, %v1437
        %1483 = vst.msk [vmem:[%s398 + $0x38] sm:$0xff] %vm1475, %v1440
        %1484 = vst.msk [vmem:[%s398 + $0x40] sm:$0xff] %vm1475, %v1445
        %1485 = vst.msk [vmem:[%s398 + $0x48] sm:$0xff] %vm1475, %v1448
        %1486 = vst.msk [vmem:[%s398 + $0x50] sm:$0xff] %vm1475, %v1453
        %1487 = vst.msk [vmem:[%s398 + $0x58] sm:$0xff] %vm1475, %v1456
        %1488 = vst.msk [vmem:[%s398 + $0x60] sm:$0xff] %vm1475, %v1461
        %1489 = vst.msk [vmem:[%s398 + $0x68] sm:$0xff] %vm1475, %v1464
        %1490 = vst.msk [vmem:[%s398 + $0x70] sm:$0xff] %vm1475, %v1469
        %1491 = vst.msk [vmem:[%s398 + $0x78] sm:$0xff] %vm1475, %v1472
        %s1492 = smul.u32 16, %s26
        %p1493 = scmp.lt.s32.totalorder %s1492, 31
        %s1494 = scalar_select %p1493, %s1492, 31
        %s1495 = smul.addr %s1494, 8
        %s1496 = scalar_lea.vmem %s8, %s1495
        // Predicated region
        $region69: #{tpu_custom_call.1} parent=51 // pred_check
          %p1497 = pneg %p222
        $region70: #{tpu_custom_call.1} parent=51 // pred_check_branch
          %1499 = sbr.rel (%p1497) target = $region72
        $region71: #{tpu_custom_call.1} parent=51 // pred_region
          %s1500 = smul.u32 16, %s26
        $region72: #{tpu_custom_call.1} parent=51 // pred_fallthru
          _
      $region52: #{tpu_custom_call.1} parent=5 // pred_fallthru
        _
      %p1501 = scmp.le.s32.totalorder 2, %s21
      // Predicated region
      $region73: #{tpu_custom_call.1} parent=5 // pred_check
        %p1502 = pneg %p1501
      $region74: #{tpu_custom_call.1} parent=5 // pred_check_branch
        %1504 = sbr.rel (%p1502) target = $region76
      $region75: #{tpu_custom_call.1} parent=5 // pred_region
        %s1505 = ssub.s32 %s21, 2
        // Predicated region
        $region77: #{tpu_custom_call.1} parent=75 // pred_check
          %p1506 = pneg %p228
        $region78: #{tpu_custom_call.1} parent=75 // pred_check_branch
          %1508 = sbr.rel (%p1506) target = $region80
        $region79: #{tpu_custom_call.1} parent=75 // pred_region
          %s1509 = smul.u32 16, %s27
          %p1510 = scmp.lt.s32.totalorder %s1509, 31
          %s1511 = scalar_select %p1510, %s1509, 31
          %s1512 = smul.addr %s1511, 8
          %s1513 = scalar_lea.vmem %s8, %s1512
        $region80: #{tpu_custom_call.1} parent=75 // pred_fallthru
          _
      $region76: #{tpu_custom_call.1} parent=5 // pred_fallthru
        _
    $region6: #{tpu_custom_call.1} parent=1 // loop_footer
      %s25 = sadd.s32 1, %s21
    $region7: #{tpu_custom_call.1} parent=1 // loop_footer_branch
      %20 = sbr.rel target = $region3
    $region8: #{tpu_custom_call.1} parent=1 // loop_exit
      _
    %1514 = vsyncpa [#allocation3], 1
    %s1515 = scalar_lea.sflag [#allocation3], 1
    %1516 = vsyncpa %s1515, 1
    %1517 = vsyncpa [#allocation5], 1
    %s1518 = scalar_lea.sflag [#allocation5], 1
    %1519 = vsyncpa %s1518, 1
    %1520 = vsyncpa [#allocation8], 1

</llo_original>
